<compile_context>
chip_gen: v6e
topology: v6e:2x2x1
jax: 0.10.0
libtpu: 0.0.40
codegen_flags: <defaults>
</compile_context>

<pallas_src>
import jax
import jax.numpy as jnp
from jax.experimental import pallas as pl
from jax.experimental.pallas import tpu as pltpu


def _round_up(x, m):
    return ((x + m - 1) // m) * m


# ----------------------------- Pallas kernel ---------------------------------
def lstm_recurrence_kernel(pre_ref, whh_ref, hout_ref, h_sc, c_sc):
    """One grid step = T time steps of the LSTM recurrence.

    pre_ref : (T, Bp, 4H)  precomputed x_t @ W_ih^T + (b_ih + b_hh), time-major
    whh_ref : (H, 4H)      hidden->gates weights (transposed PyTorch W_hh)
    hout_ref: (T, Bp, H)   hidden states h_t (lane-dense output, H % 128 == 0)
    h_sc    : (Bp, H)      persistent hidden state across chunks (VMEM scratch)
    c_sc    : (Bp, H)      persistent cell state  across chunks (VMEM scratch)
    """
    @pl.when(pl.program_id(0) == 0)
    def _():
        h_sc[...] = jnp.zeros_like(h_sc)
        c_sc[...] = jnp.zeros_like(c_sc)

    H = h_sc.shape[-1]
    T = pre_ref.shape[0]

    # Hoist loads out of the time loop; carry h/c in registers for the chunk.
    whh = whh_ref[...]
    h = h_sc[...]
    c = c_sc[...]

    # Short, fully-unrolled time loop (T is a small static chunk size): the
    # scheduler can overlap MXU (h @ Whh), EUP (sigmoid/tanh) and VPU work
    # across adjacent steps within the chunk.
    for t in range(T):
        gates = pre_ref[t] + jnp.dot(h, whh, preferred_element_type=jnp.float32)
        # PyTorch LSTM gate order: i, f, g, o  (H is lane-aligned -> free slices)
        i = jax.nn.sigmoid(gates[:, 0 * H:1 * H])
        f = jax.nn.sigmoid(gates[:, 1 * H:2 * H])
        g = jnp.tanh(gates[:, 2 * H:3 * H])
        o = jax.nn.sigmoid(gates[:, 3 * H:4 * H])

        c = f * c + i * g
        h = o * jnp.tanh(c)
        hout_ref[t] = h          # unmasked (Bp, H) vector store

    # Single state write-back per chunk.
    h_sc[...] = h
    c_sc[...] = c


# ------------------------------- wrapper --------------------------------------
def lstm_discriminator_forward(x, params, *, t_chunk=16):
    """x: (B, S, IN) float32 -> (B, S, 1) float32 (matches the PyTorch module)."""
    B, S, IN = x.shape
    wih_t = params["wih_t"]    # (IN, 4H)  = W_ih^T
    whh_t = params["whh_t"]    # (H, 4H)   = W_hh^T
    b     = params["b"]        # (1, 4H)   = b_ih + b_hh
    wlin  = params["wlin"]     # (H, 1)
    blin  = params["blin"]     # (1, 1)
    H = whh_t.shape[0]

    # Pad batch to fill vreg sublanes / MXU rows; padded rows are independent
    # in the recurrence and get sliced away at the end. Pad S to a whole number
    # of chunks (padded steps just compute throw-away work on zero inputs).
    Bp = max(8, _round_up(B, 8))
    T = min(t_chunk, S)
    Sp = _round_up(S, T)
    n_chunks = Sp // T

    x_p = jnp.pad(x, ((0, Bp - B), (0, Sp - S), (0, 0))).astype(jnp.float32)

    # ---- Hoisted input projection: one (Sp*Bp, IN) @ (IN, 4H) matmul outside
    #      the serial critical path, laid out time-major for the kernel.
    pre = jnp.einsum('bsi,ig->sbg', x_p, wih_t) + b        # (Sp, Bp, 4H) f32

    h_seq = pl.pallas_call(
        lstm_recurrence_kernel,
        out_shape=jax.ShapeDtypeStruct((Sp, Bp, H), jnp.float32),
        grid_spec=pltpu.PrefetchScalarGridSpec(
            num_scalar_prefetch=0,
            grid=(n_chunks,),
            in_specs=[
                pl.BlockSpec((T, Bp, 4 * H), lambda c: (c, 0, 0)),  # pre-gates chunk
                pl.BlockSpec((H, 4 * H),     lambda c: (0, 0)),     # W_hh^T (VMEM-resident)
            ],
            out_specs=pl.BlockSpec((T, Bp, H), lambda c: (c, 0, 0)),
            scratch_shapes=[
                pltpu.VMEM((Bp, H), jnp.float32),   # h state (persists across chunks)
                pltpu.VMEM((Bp, H), jnp.float32),   # c state
            ],
        ),
        compiler_params=pltpu.CompilerParams(
            dimension_semantics=("arbitrary",)),   # time recurrence is sequential
    )(pre, whh_t)

    # ---- Hoisted output head: Linear(H -> 1) + Sigmoid over the whole sequence
    #      in one matmul instead of S masked 1-lane stores inside the kernel.
    h_seq = h_seq[:S, :B, :]                                 # (S, B, H)
    logits = jnp.einsum('sbh,hk->sbk', h_seq, wlin) + blin   # (S, B, 1)
    return jnp.transpose(jax.nn.sigmoid(logits), (1, 0, 2))  # (B, S, 1)


# --------------------------- pure-JAX reference --------------------------------
def reference_forward(x, params):
    wih_t, whh_t, b = params["wih_t"], params["whh_t"], params["b"]
    wlin, blin = params["wlin"], params["blin"]
    B, S, IN = x.shape
    H = whh_t.shape[0]

    def step(carry, x_t):
        h, c = carry
        gates = x_t @ wih_t + h @ whh_t + b
        i = jax.nn.sigmoid(gates[:, 0 * H:1 * H])
        f = jax.nn.sigmoid(gates[:, 1 * H:2 * H])
        g = jnp.tanh(gates[:, 2 * H:3 * H])
        o = jax.nn.sigmoid(gates[:, 3 * H:4 * H])
        c = f * c + i * g
        h = o * jnp.tanh(c)
        y = jax.nn.sigmoid(h @ wlin + blin)
        return (h, c), y

    init = (jnp.zeros((B, H), jnp.float32), jnp.zeros((B, H), jnp.float32))
    _, ys = jax.lax.scan(step, init, jnp.swapaxes(x, 0, 1))  # (S, B, 1)
    return jnp.swapaxes(ys, 0, 1)                            # (B, S, 1)


# ------------------------------- params ----------------------------------------
def init_params(key, ts_dim, hidden_dim):
    """Deterministic init mimicking PyTorch uniform(-1/sqrt(H), 1/sqrt(H))."""
    k = 1.0 / jnp.sqrt(jnp.float32(hidden_dim))
    ks = jax.random.split(key, 6)
    u = lambda kk, shape: jax.random.uniform(kk, shape, jnp.float32, -k, k)
    wih_t = u(ks[0], (ts_dim, 4 * hidden_dim))          # W_ih^T
    whh_t = u(ks[1], (hidden_dim, 4 * hidden_dim))      # W_hh^T
    b = u(ks[2], (1, 4 * hidden_dim)) + u(ks[3], (1, 4 * hidden_dim))  # b_ih + b_hh
    wlin = u(ks[4], (hidden_dim, 1))
    blin = u(ks[5], (1, 1))
    return dict(wih_t=wih_t, whh_t=whh_t, b=b, wlin=wlin, blin=blin)


# -------------------------------- main ------------------------------------------
if __name__ == "__main__":
    batch, seq_len, ts_dim, hidden_dim = 2, 8, 4, 128  # hidden % 128 == 0 -> lane-aligned gates

    key = jax.random.PRNGKey(0)
    kx, kp = jax.random.split(key)
    x = jax.random.normal(kx, (batch, seq_len, ts_dim), jnp.float32)
    params = init_params(kp, ts_dim, hidden_dim)

    out = lstm_discriminator_forward(x, params)
    out = jax.block_until_ready(out)

    ref = jax.block_until_ready(reference_forward(x, params))
    assert out.shape == (batch, seq_len, 1)
    assert jnp.allclose(out, ref, rtol=1e-3, atol=1e-3), "mismatch vs reference"

    print("KERNEL_OK")
</pallas_src>

<mosaic_0001>
module attributes {stable_mosaic.version = 11 : i64} {
  func.func @lstm_recurrence_kernel(%arg0: i32, %arg1: memref<8x8x512xf32, #tpu.memory_space<vmem>>, %arg2: memref<128x512xf32, #tpu.memory_space<vmem>>, %arg3: memref<8x8x128xf32, #tpu.memory_space<vmem>>, %arg4: memref<8x128xf32, #tpu.memory_space<vmem>>, %arg5: memref<8x128xf32, #tpu.memory_space<vmem>>) attributes {dimension_semantics = [#tpu.dimension_semantics<arbitrary>], iteration_bounds = array<i64: 1>, scalar_prefetch = 0 : i64, scratch_operands = 2 : i64, tpu.core_type = #tpu.core_type<tc>, window_params = [{transform_indices = @transform_0, window_bounds = array<i64: 8, 8, 512>}, {pipeline_mode = #tpu.pipeline_mode<synchronous>, transform_indices = @transform_1, window_bounds = array<i64: 128, 512>}, {transform_indices = @transform_2, window_bounds = array<i64: 8, 8, 128>}]} {
    %c0_i32 = arith.constant 0 : i32
    %0 = arith.cmpi eq, %arg0, %c0_i32 : i32
    %1 = arith.extui %0 : i1 to i32
    %c0_i32_0 = arith.constant 0 : i32
    %2 = arith.cmpi ne, %1, %c0_i32_0 : i32
    scf.if %2 {
      %cst_82 = arith.constant 0.000000e+00 : f32
      %264 = vector.broadcast %cst_82 : f32 to vector<8x128xf32>
      %c0_83 = arith.constant 0 : index
      %c0_84 = arith.constant 0 : index
      %265 = vector.load %arg4[%c0_83, %c0_84] : memref<8x128xf32, #tpu.memory_space<vmem>>, vector<8x128xf32>
      tpu.vector_store %arg4[%c0_83, %c0_84], %264 {strides = array<i32>} : memref<8x128xf32, #tpu.memory_space<vmem>>, vector<8x128xf32>,
      %cst_85 = arith.constant 0.000000e+00 : f32
      %266 = vector.broadcast %cst_85 : f32 to vector<8x128xf32>
      %c0_86 = arith.constant 0 : index
      %c0_87 = arith.constant 0 : index
      %267 = vector.load %arg5[%c0_86, %c0_87] : memref<8x128xf32, #tpu.memory_space<vmem>>, vector<8x128xf32>
      tpu.vector_store %arg5[%c0_86, %c0_87], %266 {strides = array<i32>} : memref<8x128xf32, #tpu.memory_space<vmem>>, vector<8x128xf32>,
    } else {
    }
    %c0 = arith.constant 0 : index
    %c0_1 = arith.constant 0 : index
    %3 = vector.load %arg2[%c0, %c0_1] : memref<128x512xf32, #tpu.memory_space<vmem>>, vector<128x512xf32>
    %c0_2 = arith.constant 0 : index
    %c0_3 = arith.constant 0 : index
    %4 = vector.load %arg4[%c0_2, %c0_3] : memref<8x128xf32, #tpu.memory_space<vmem>>, vector<8x128xf32>
    %c0_4 = arith.constant 0 : index
    %c0_5 = arith.constant 0 : index
    %5 = vector.load %arg5[%c0_4, %c0_5] : memref<8x128xf32, #tpu.memory_space<vmem>>, vector<8x128xf32>
    %c0_6 = arith.constant 0 : index
    %c0_7 = arith.constant 0 : index
    %c0_8 = arith.constant 0 : index
    %6 = vector.load %arg1[%c0_6, %c0_7, %c0_8] : memref<8x8x512xf32, #tpu.memory_space<vmem>>, vector<1x8x512xf32>
    %7 = vector.shape_cast %6 : vector<1x8x512xf32> to vector<8x512xf32>
    %cst = arith.constant dense<0.000000e+00> : vector<8x512xf32>
    %8 = tpu.matmul %4, %3, %cst {dimension_numbers = #tpu.dot_dimension_numbers<[1], [0], [0], [1], [0, 0, 1, 1], [], []>} : vector<8x128xf32>, vector<128x512xf32>, vector<8x512xf32> -> vector<8x512xf32>
    %9 = arith.addf %7, %8 : vector<8x512xf32>
    %10 = vector.extract_strided_slice %9 {offsets = [0, 0], sizes = [8, 128], strides = [1, 1]} : vector<8x512xf32> to vector<8x128xf32>
    %11 = arith.negf %10 : vector<8x128xf32>
    %12 = math.exp %11 : vector<8x128xf32>
    %cst_9 = arith.constant 1.000000e+00 : f32
    %13 = vector.broadcast %cst_9 : f32 to vector<8x128xf32>
    %14 = arith.addf %13, %12 : vector<8x128xf32>
    %15 = arith.divf %13, %14 : vector<8x128xf32>
    %16 = vector.extract_strided_slice %9 {offsets = [0, 128], sizes = [8, 128], strides = [1, 1]} : vector<8x512xf32> to vector<8x128xf32>
    %17 = arith.negf %16 : vector<8x128xf32>
    %18 = math.exp %17 : vector<8x128xf32>
    %cst_10 = arith.constant 1.000000e+00 : f32
    %19 = vector.broadcast %cst_10 : f32 to vector<8x128xf32>
    %20 = arith.addf %19, %18 : vector<8x128xf32>
    %21 = arith.divf %19, %20 : vector<8x128xf32>
    %22 = vector.extract_strided_slice %9 {offsets = [0, 256], sizes = [8, 128], strides = [1, 1]} : vector<8x512xf32> to vector<8x128xf32>
    %23 = math.tanh %22 : vector<8x128xf32>
    %24 = vector.extract_strided_slice %9 {offsets = [0, 384], sizes = [8, 128], strides = [1, 1]} : vector<8x512xf32> to vector<8x128xf32>
    %25 = arith.negf %24 : vector<8x128xf32>
    %26 = math.exp %25 : vector<8x128xf32>
    %cst_11 = arith.constant 1.000000e+00 : f32
    %27 = vector.broadcast %cst_11 : f32 to vector<8x128xf32>
    %28 = arith.addf %27, %26 : vector<8x128xf32>
    %29 = arith.divf %27, %28 : vector<8x128xf32>
    %30 = arith.mulf %21, %5 : vector<8x128xf32>
    %31 = arith.mulf %15, %23 : vector<8x128xf32>
    %32 = arith.addf %30, %31 : vector<8x128xf32>
    %33 = math.tanh %32 : vector<8x128xf32>
    %34 = arith.mulf %29, %33 : vector<8x128xf32>
    %c0_12 = arith.constant 0 : index
    %c0_13 = arith.constant 0 : index
    %c0_14 = arith.constant 0 : index
    %35 = vector.load %arg3[%c0_12, %c0_13, %c0_14] : memref<8x8x128xf32, #tpu.memory_space<vmem>>, vector<1x8x128xf32>
    %36 = vector.shape_cast %35 : vector<1x8x128xf32> to vector<8x128xf32>
    %37 = vector.shape_cast %34 : vector<8x128xf32> to vector<1x8x128xf32>
    tpu.vector_store %arg3[%c0_12, %c0_13, %c0_14], %37 {strides = array<i32>} : memref<8x8x128xf32, #tpu.memory_space<vmem>>, vector<1x8x128xf32>,
    %c1 = arith.constant 1 : index
    %c0_15 = arith.constant 0 : index
    %c0_16 = arith.constant 0 : index
    %38 = vector.load %arg1[%c1, %c0_15, %c0_16] : memref<8x8x512xf32, #tpu.memory_space<vmem>>, vector<1x8x512xf32>
    %39 = vector.shape_cast %38 : vector<1x8x512xf32> to vector<8x512xf32>
    %cst_17 = arith.constant dense<0.000000e+00> : vector<8x512xf32>
    %40 = tpu.matmul %34, %3, %cst_17 {dimension_numbers = #tpu.dot_dimension_numbers<[1], [0], [0], [1], [0, 0, 1, 1], [], []>} : vector<8x128xf32>, vector<128x512xf32>, vector<8x512xf32> -> vector<8x512xf32>
    %41 = arith.addf %39, %40 : vector<8x512xf32>
    %42 = vector.extract_strided_slice %41 {offsets = [0, 0], sizes = [8, 128], strides = [1, 1]} : vector<8x512xf32> to vector<8x128xf32>
    %43 = arith.negf %42 : vector<8x128xf32>
    %44 = math.exp %43 : vector<8x128xf32>
    %cst_18 = arith.constant 1.000000e+00 : f32
    %45 = vector.broadcast %cst_18 : f32 to vector<8x128xf32>
    %46 = arith.addf %45, %44 : vector<8x128xf32>
    %47 = arith.divf %45, %46 : vector<8x128xf32>
    %48 = vector.extract_strided_slice %41 {offsets = [0, 128], sizes = [8, 128], strides = [1, 1]} : vector<8x512xf32> to vector<8x128xf32>
    %49 = arith.negf %48 : vector<8x128xf32>
    %50 = math.exp %49 : vector<8x128xf32>
    %cst_19 = arith.constant 1.000000e+00 : f32
    %51 = vector.broadcast %cst_19 : f32 to vector<8x128xf32>
    %52 = arith.addf %51, %50 : vector<8x128xf32>
    %53 = arith.divf %51, %52 : vector<8x128xf32>
    %54 = vector.extract_strided_slice %41 {offsets = [0, 256], sizes = [8, 128], strides = [1, 1]} : vector<8x512xf32> to vector<8x128xf32>
    %55 = math.tanh %54 : vector<8x128xf32>
    %56 = vector.extract_strided_slice %41 {offsets = [0, 384], sizes = [8, 128], strides = [1, 1]} : vector<8x512xf32> to vector<8x128xf32>
    %57 = arith.negf %56 : vector<8x128xf32>
    %58 = math.exp %57 : vector<8x128xf32>
    %cst_20 = arith.constant 1.000000e+00 : f32
    %59 = vector.broadcast %cst_20 : f32 to vector<8x128xf32>
    %60 = arith.addf %59, %58 : vector<8x128xf32>
    %61 = arith.divf %59, %60 : vector<8x128xf32>
    %62 = arith.mulf %53, %32 : vector<8x128xf32>
    %63 = arith.mulf %47, %55 : vector<8x128xf32>
    %64 = arith.addf %62, %63 : vector<8x128xf32>
    %65 = math.tanh %64 : vector<8x128xf32>
    %66 = arith.mulf %61, %65 : vector<8x128xf32>
    %c1_21 = arith.constant 1 : index
    %c0_22 = arith.constant 0 : index
    %c0_23 = arith.constant 0 : index
    %67 = vector.load %arg3[%c1_21, %c0_22, %c0_23] : memref<8x8x128xf32, #tpu.memory_space<vmem>>, vector<1x8x128xf32>
    %68 = vector.shape_cast %67 : vector<1x8x128xf32> to vector<8x128xf32>
    %69 = vector.shape_cast %66 : vector<8x128xf32> to vector<1x8x128xf32>
    tpu.vector_store %arg3[%c1_21, %c0_22, %c0_23], %69 {strides = array<i32>} : memref<8x8x128xf32, #tpu.memory_space<vmem>>, vector<1x8x128xf32>,
    %c2 = arith.constant 2 : index
    %c0_24 = arith.constant 0 : index
    %c0_25 = arith.constant 0 : index
    %70 = vector.load %arg1[%c2, %c0_24, %c0_25] : memref<8x8x512xf32, #tpu.memory_space<vmem>>, vector<1x8x512xf32>
    %71 = vector.shape_cast %70 : vector<1x8x512xf32> to vector<8x512xf32>
    %cst_26 = arith.constant dense<0.000000e+00> : vector<8x512xf32>
    %72 = tpu.matmul %66, %3, %cst_26 {dimension_numbers = #tpu.dot_dimension_numbers<[1], [0], [0], [1], [0, 0, 1, 1], [], []>} : vector<8x128xf32>, vector<128x512xf32>, vector<8x512xf32> -> vector<8x512xf32>
    %73 = arith.addf %71, %72 : vector<8x512xf32>
    %74 = vector.extract_strided_slice %73 {offsets = [0, 0], sizes = [8, 128], strides = [1, 1]} : vector<8x512xf32> to vector<8x128xf32>
    %75 = arith.negf %74 : vector<8x128xf32>
    %76 = math.exp %75 : vector<8x128xf32>
    %cst_27 = arith.constant 1.000000e+00 : f32
    %77 = vector.broadcast %cst_27 : f32 to vector<8x128xf32>
    %78 = arith.addf %77, %76 : vector<8x128xf32>
    %79 = arith.divf %77, %78 : vector<8x128xf32>
    %80 = vector.extract_strided_slice %73 {offsets = [0, 128], sizes = [8, 128], strides = [1, 1]} : vector<8x512xf32> to vector<8x128xf32>
    %81 = arith.negf %80 : vector<8x128xf32>
    %82 = math.exp %81 : vector<8x128xf32>
    %cst_28 = arith.constant 1.000000e+00 : f32
    %83 = vector.broadcast %cst_28 : f32 to vector<8x128xf32>
    %84 = arith.addf %83, %82 : vector<8x128xf32>
    %85 = arith.divf %83, %84 : vector<8x128xf32>
    %86 = vector.extract_strided_slice %73 {offsets = [0, 256], sizes = [8, 128], strides = [1, 1]} : vector<8x512xf32> to vector<8x128xf32>
    %87 = math.tanh %86 : vector<8x128xf32>
    %88 = vector.extract_strided_slice %73 {offsets = [0, 384], sizes = [8, 128], strides = [1, 1]} : vector<8x512xf32> to vector<8x128xf32>
    %89 = arith.negf %88 : vector<8x128xf32>
    %90 = math.exp %89 : vector<8x128xf32>
    %cst_29 = arith.constant 1.000000e+00 : f32
    %91 = vector.broadcast %cst_29 : f32 to vector<8x128xf32>
    %92 = arith.addf %91, %90 : vector<8x128xf32>
    %93 = arith.divf %91, %92 : vector<8x128xf32>
    %94 = arith.mulf %85, %64 : vector<8x128xf32>
    %95 = arith.mulf %79, %87 : vector<8x128xf32>
    %96 = arith.addf %94, %95 : vector<8x128xf32>
    %97 = math.tanh %96 : vector<8x128xf32>
    %98 = arith.mulf %93, %97 : vector<8x128xf32>
    %c2_30 = arith.constant 2 : index
    %c0_31 = arith.constant 0 : index
    %c0_32 = arith.constant 0 : index
    %99 = vector.load %arg3[%c2_30, %c0_31, %c0_32] : memref<8x8x128xf32, #tpu.memory_space<vmem>>, vector<1x8x128xf32>
    %100 = vector.shape_cast %99 : vector<1x8x128xf32> to vector<8x128xf32>
    %101 = vector.shape_cast %98 : vector<8x128xf32> to vector<1x8x128xf32>
    tpu.vector_store %arg3[%c2_30, %c0_31, %c0_32], %101 {strides = array<i32>} : memref<8x8x128xf32, #tpu.memory_space<vmem>>, vector<1x8x128xf32>,
    %c3 = arith.constant 3 : index
    %c0_33 = arith.constant 0 : index
    %c0_34 = arith.constant 0 : index
    %102 = vector.load %arg1[%c3, %c0_33, %c0_34] : memref<8x8x512xf32, #tpu.memory_space<vmem>>, vector<1x8x512xf32>
    %103 = vector.shape_cast %102 : vector<1x8x512xf32> to vector<8x512xf32>
    %cst_35 = arith.constant dense<0.000000e+00> : vector<8x512xf32>
    %104 = tpu.matmul %98, %3, %cst_35 {dimension_numbers = #tpu.dot_dimension_numbers<[1], [0], [0], [1], [0, 0, 1, 1], [], []>} : vector<8x128xf32>, vector<128x512xf32>, vector<8x512xf32> -> vector<8x512xf32>
    %105 = arith.addf %103, %104 : vector<8x512xf32>
    %106 = vector.extract_strided_slice %105 {offsets = [0, 0], sizes = [8, 128], strides = [1, 1]} : vector<8x512xf32> to vector<8x128xf32>
    %107 = arith.negf %106 : vector<8x128xf32>
    %108 = math.exp %107 : vector<8x128xf32>
    %cst_36 = arith.constant 1.000000e+00 : f32
    %109 = vector.broadcast %cst_36 : f32 to vector<8x128xf32>
    %110 = arith.addf %109, %108 : vector<8x128xf32>
    %111 = arith.divf %109, %110 : vector<8x128xf32>
    %112 = vector.extract_strided_slice %105 {offsets = [0, 128], sizes = [8, 128], strides = [1, 1]} : vector<8x512xf32> to vector<8x128xf32>
    %113 = arith.negf %112 : vector<8x128xf32>
    %114 = math.exp %113 : vector<8x128xf32>
    %cst_37 = arith.constant 1.000000e+00 : f32
    %115 = vector.broadcast %cst_37 : f32 to vector<8x128xf32>
    %116 = arith.addf %115, %114 : vector<8x128xf32>
    %117 = arith.divf %115, %116 : vector<8x128xf32>
    %118 = vector.extract_strided_slice %105 {offsets = [0, 256], sizes = [8, 128], strides = [1, 1]} : vector<8x512xf32> to vector<8x128xf32>
    %119 = math.tanh %118 : vector<8x128xf32>
    %120 = vector.extract_strided_slice %105 {offsets = [0, 384], sizes = [8, 128], strides = [1, 1]} : vector<8x512xf32> to vector<8x128xf32>
    %121 = arith.negf %120 : vector<8x128xf32>
    %122 = math.exp %121 : vector<8x128xf32>
    %cst_38 = arith.constant 1.000000e+00 : f32
    %123 = vector.broadcast %cst_38 : f32 to vector<8x128xf32>
    %124 = arith.addf %123, %122 : vector<8x128xf32>
    %125 = arith.divf %123, %124 : vector<8x128xf32>
    %126 = arith.mulf %117, %96 : vector<8x128xf32>
    %127 = arith.mulf %111, %119 : vector<8x128xf32>
    %128 = arith.addf %126, %127 : vector<8x128xf32>
    %129 = math.tanh %128 : vector<8x128xf32>
    %130 = arith.mulf %125, %129 : vector<8x128xf32>
    %c3_39 = arith.constant 3 : index
    %c0_40 = arith.constant 0 : index
    %c0_41 = arith.constant 0 : index
    %131 = vector.load %arg3[%c3_39, %c0_40, %c0_41] : memref<8x8x128xf32, #tpu.memory_space<vmem>>, vector<1x8x128xf32>
    %132 = vector.shape_cast %131 : vector<1x8x128xf32> to vector<8x128xf32>
    %133 = vector.shape_cast %130 : vector<8x128xf32> to vector<1x8x128xf32>
    tpu.vector_store %arg3[%c3_39, %c0_40, %c0_41], %133 {strides = array<i32>} : memref<8x8x128xf32, #tpu.memory_space<vmem>>, vector<1x8x128xf32>,
    %c4 = arith.constant 4 : index
    %c0_42 = arith.constant 0 : index
    %c0_43 = arith.constant 0 : index
    %134 = vector.load %arg1[%c4, %c0_42, %c0_43] : memref<8x8x512xf32, #tpu.memory_space<vmem>>, vector<1x8x512xf32>
    %135 = vector.shape_cast %134 : vector<1x8x512xf32> to vector<8x512xf32>
    %cst_44 = arith.constant dense<0.000000e+00> : vector<8x512xf32>
    %136 = tpu.matmul %130, %3, %cst_44 {dimension_numbers = #tpu.dot_dimension_numbers<[1], [0], [0], [1], [0, 0, 1, 1], [], []>} : vector<8x128xf32>, vector<128x512xf32>, vector<8x512xf32> -> vector<8x512xf32>
    %137 = arith.addf %135, %136 : vector<8x512xf32>
    %138 = vector.extract_strided_slice %137 {offsets = [0, 0], sizes = [8, 128], strides = [1, 1]} : vector<8x512xf32> to vector<8x128xf32>
    %139 = arith.negf %138 : vector<8x128xf32>
    %140 = math.exp %139 : vector<8x128xf32>
    %cst_45 = arith.constant 1.000000e+00 : f32
    %141 = vector.broadcast %cst_45 : f32 to vector<8x128xf32>
    %142 = arith.addf %141, %140 : vector<8x128xf32>
    %143 = arith.divf %141, %142 : vector<8x128xf32>
    %144 = vector.extract_strided_slice %137 {offsets = [0, 128], sizes = [8, 128], strides = [1, 1]} : vector<8x512xf32> to vector<8x128xf32>
    %145 = arith.negf %144 : vector<8x128xf32>
    %146 = math.exp %145 : vector<8x128xf32>
    %cst_46 = arith.constant 1.000000e+00 : f32
    %147 = vector.broadcast %cst_46 : f32 to vector<8x128xf32>
    %148 = arith.addf %147, %146 : vector<8x128xf32>
    %149 = arith.divf %147, %148 : vector<8x128xf32>
    %150 = vector.extract_strided_slice %137 {offsets = [0, 256], sizes = [8, 128], strides = [1, 1]} : vector<8x512xf32> to vector<8x128xf32>
    %151 = math.tanh %150 : vector<8x128xf32>
    %152 = vector.extract_strided_slice %137 {offsets = [0, 384], sizes = [8, 128], strides = [1, 1]} : vector<8x512xf32> to vector<8x128xf32>
    %153 = arith.negf %152 : vector<8x128xf32>
    %154 = math.exp %153 : vector<8x128xf32>
    %cst_47 = arith.constant 1.000000e+00 : f32
    %155 = vector.broadcast %cst_47 : f32 to vector<8x128xf32>
    %156 = arith.addf %155, %154 : vector<8x128xf32>
    %157 = arith.divf %155, %156 : vector<8x128xf32>
    %158 = arith.mulf %149, %128 : vector<8x128xf32>
    %159 = arith.mulf %143, %151 : vector<8x128xf32>
    %160 = arith.addf %158, %159 : vector<8x128xf32>
    %161 = math.tanh %160 : vector<8x128xf32>
    %162 = arith.mulf %157, %161 : vector<8x128xf32>
    %c4_48 = arith.constant 4 : index
    %c0_49 = arith.constant 0 : index
    %c0_50 = arith.constant 0 : index
    %163 = vector.load %arg3[%c4_48, %c0_49, %c0_50] : memref<8x8x128xf32, #tpu.memory_space<vmem>>, vector<1x8x128xf32>
    %164 = vector.shape_cast %163 : vector<1x8x128xf32> to vector<8x128xf32>
    %165 = vector.shape_cast %162 : vector<8x128xf32> to vector<1x8x128xf32>
    tpu.vector_store %arg3[%c4_48, %c0_49, %c0_50], %165 {strides = array<i32>} : memref<8x8x128xf32, #tpu.memory_space<vmem>>, vector<1x8x128xf32>,
    %c5 = arith.constant 5 : index
    %c0_51 = arith.constant 0 : index
    %c0_52 = arith.constant 0 : index
    %166 = vector.load %arg1[%c5, %c0_51, %c0_52] : memref<8x8x512xf32, #tpu.memory_space<vmem>>, vector<1x8x512xf32>
    %167 = vector.shape_cast %166 : vector<1x8x512xf32> to vector<8x512xf32>
    %cst_53 = arith.constant dense<0.000000e+00> : vector<8x512xf32>
    %168 = tpu.matmul %162, %3, %cst_53 {dimension_numbers = #tpu.dot_dimension_numbers<[1], [0], [0], [1], [0, 0, 1, 1], [], []>} : vector<8x128xf32>, vector<128x512xf32>, vector<8x512xf32> -> vector<8x512xf32>
    %169 = arith.addf %167, %168 : vector<8x512xf32>
    %170 = vector.extract_strided_slice %169 {offsets = [0, 0], sizes = [8, 128], strides = [1, 1]} : vector<8x512xf32> to vector<8x128xf32>
    %171 = arith.negf %170 : vector<8x128xf32>
    %172 = math.exp %171 : vector<8x128xf32>
    %cst_54 = arith.constant 1.000000e+00 : f32
    %173 = vector.broadcast %cst_54 : f32 to vector<8x128xf32>
    %174 = arith.addf %173, %172 : vector<8x128xf32>
    %175 = arith.divf %173, %174 : vector<8x128xf32>
    %176 = vector.extract_strided_slice %169 {offsets = [0, 128], sizes = [8, 128], strides = [1, 1]} : vector<8x512xf32> to vector<8x128xf32>
    %177 = arith.negf %176 : vector<8x128xf32>
    %178 = math.exp %177 : vector<8x128xf32>
    %cst_55 = arith.constant 1.000000e+00 : f32
    %179 = vector.broadcast %cst_55 : f32 to vector<8x128xf32>
    %180 = arith.addf %179, %178 : vector<8x128xf32>
    %181 = arith.divf %179, %180 : vector<8x128xf32>
    %182 = vector.extract_strided_slice %169 {offsets = [0, 256], sizes = [8, 128], strides = [1, 1]} : vector<8x512xf32> to vector<8x128xf32>
    %183 = math.tanh %182 : vector<8x128xf32>
    %184 = vector.extract_strided_slice %169 {offsets = [0, 384], sizes = [8, 128], strides = [1, 1]} : vector<8x512xf32> to vector<8x128xf32>
    %185 = arith.negf %184 : vector<8x128xf32>
    %186 = math.exp %185 : vector<8x128xf32>
    %cst_56 = arith.constant 1.000000e+00 : f32
    %187 = vector.broadcast %cst_56 : f32 to vector<8x128xf32>
    %188 = arith.addf %187, %186 : vector<8x128xf32>
    %189 = arith.divf %187, %188 : vector<8x128xf32>
    %190 = arith.mulf %181, %160 : vector<8x128xf32>
    %191 = arith.mulf %175, %183 : vector<8x128xf32>
    %192 = arith.addf %190, %191 : vector<8x128xf32>
    %193 = math.tanh %192 : vector<8x128xf32>
    %194 = arith.mulf %189, %193 : vector<8x128xf32>
    %c5_57 = arith.constant 5 : index
    %c0_58 = arith.constant 0 : index
    %c0_59 = arith.constant 0 : index
    %195 = vector.load %arg3[%c5_57, %c0_58, %c0_59] : memref<8x8x128xf32, #tpu.memory_space<vmem>>, vector<1x8x128xf32>
    %196 = vector.shape_cast %195 : vector<1x8x128xf32> to vector<8x128xf32>
    %197 = vector.shape_cast %194 : vector<8x128xf32> to vector<1x8x128xf32>
    tpu.vector_store %arg3[%c5_57, %c0_58, %c0_59], %197 {strides = array<i32>} : memref<8x8x128xf32, #tpu.memory_space<vmem>>, vector<1x8x128xf32>,
    %c6 = arith.constant 6 : index
    %c0_60 = arith.constant 0 : index
    %c0_61 = arith.constant 0 : index
    %198 = vector.load %arg1[%c6, %c0_60, %c0_61] : memref<8x8x512xf32, #tpu.memory_space<vmem>>, vector<1x8x512xf32>
    %199 = vector.shape_cast %198 : vector<1x8x512xf32> to vector<8x512xf32>
    %cst_62 = arith.constant dense<0.000000e+00> : vector<8x512xf32>
    %200 = tpu.matmul %194, %3, %cst_62 {dimension_numbers = #tpu.dot_dimension_numbers<[1], [0], [0], [1], [0, 0, 1, 1], [], []>} : vector<8x128xf32>, vector<128x512xf32>, vector<8x512xf32> -> vector<8x512xf32>
    %201 = arith.addf %199, %200 : vector<8x512xf32>
    %202 = vector.extract_strided_slice %201 {offsets = [0, 0], sizes = [8, 128], strides = [1, 1]} : vector<8x512xf32> to vector<8x128xf32>
    %203 = arith.negf %202 : vector<8x128xf32>
    %204 = math.exp %203 : vector<8x128xf32>
    %cst_63 = arith.constant 1.000000e+00 : f32
    %205 = vector.broadcast %cst_63 : f32 to vector<8x128xf32>
    %206 = arith.addf %205, %204 : vector<8x128xf32>
    %207 = arith.divf %205, %206 : vector<8x128xf32>
    %208 = vector.extract_strided_slice %201 {offsets = [0, 128], sizes = [8, 128], strides = [1, 1]} : vector<8x512xf32> to vector<8x128xf32>
    %209 = arith.negf %208 : vector<8x128xf32>
    %210 = math.exp %209 : vector<8x128xf32>
    %cst_64 = arith.constant 1.000000e+00 : f32
    %211 = vector.broadcast %cst_64 : f32 to vector<8x128xf32>
    %212 = arith.addf %211, %210 : vector<8x128xf32>
    %213 = arith.divf %211, %212 : vector<8x128xf32>
    %214 = vector.extract_strided_slice %201 {offsets = [0, 256], sizes = [8, 128], strides = [1, 1]} : vector<8x512xf32> to vector<8x128xf32>
    %215 = math.tanh %214 : vector<8x128xf32>
    %216 = vector.extract_strided_slice %201 {offsets = [0, 384], sizes = [8, 128], strides = [1, 1]} : vector<8x512xf32> to vector<8x128xf32>
    %217 = arith.negf %216 : vector<8x128xf32>
    %218 = math.exp %217 : vector<8x128xf32>
    %cst_65 = arith.constant 1.000000e+00 : f32
    %219 = vector.broadcast %cst_65 : f32 to vector<8x128xf32>
    %220 = arith.addf %219, %218 : vector<8x128xf32>
    %221 = arith.divf %219, %220 : vector<8x128xf32>
    %222 = arith.mulf %213, %192 : vector<8x128xf32>
    %223 = arith.mulf %207, %215 : vector<8x128xf32>
    %224 = arith.addf %222, %223 : vector<8x128xf32>
    %225 = math.tanh %224 : vector<8x128xf32>
    %226 = arith.mulf %221, %225 : vector<8x128xf32>
    %c6_66 = arith.constant 6 : index
    %c0_67 = arith.constant 0 : index
    %c0_68 = arith.constant 0 : index
    %227 = vector.load %arg3[%c6_66, %c0_67, %c0_68] : memref<8x8x128xf32, #tpu.memory_space<vmem>>, vector<1x8x128xf32>
    %228 = vector.shape_cast %227 : vector<1x8x128xf32> to vector<8x128xf32>
    %229 = vector.shape_cast %226 : vector<8x128xf32> to vector<1x8x128xf32>
    tpu.vector_store %arg3[%c6_66, %c0_67, %c0_68], %229 {strides = array<i32>} : memref<8x8x128xf32, #tpu.memory_space<vmem>>, vector<1x8x128xf32>,
    %c7 = arith.constant 7 : index
    %c0_69 = arith.constant 0 : index
    %c0_70 = arith.constant 0 : index
    %230 = vector.load %arg1[%c7, %c0_69, %c0_70] : memref<8x8x512xf32, #tpu.memory_space<vmem>>, vector<1x8x512xf32>
    %231 = vector.shape_cast %230 : vector<1x8x512xf32> to vector<8x512xf32>
    %cst_71 = arith.constant dense<0.000000e+00> : vector<8x512xf32>
    %232 = tpu.matmul %226, %3, %cst_71 {dimension_numbers = #tpu.dot_dimension_numbers<[1], [0], [0], [1], [0, 0, 1, 1], [], []>} : vector<8x128xf32>, vector<128x512xf32>, vector<8x512xf32> -> vector<8x512xf32>
    %233 = arith.addf %231, %232 : vector<8x512xf32>
    %234 = vector.extract_strided_slice %233 {offsets = [0, 0], sizes = [8, 128], strides = [1, 1]} : vector<8x512xf32> to vector<8x128xf32>
    %235 = arith.negf %234 : vector<8x128xf32>
    %236 = math.exp %235 : vector<8x128xf32>
    %cst_72 = arith.constant 1.000000e+00 : f32
    %237 = vector.broadcast %cst_72 : f32 to vector<8x128xf32>
    %238 = arith.addf %237, %236 : vector<8x128xf32>
    %239 = arith.divf %237, %238 : vector<8x128xf32>
    %240 = vector.extract_strided_slice %233 {offsets = [0, 128], sizes = [8, 128], strides = [1, 1]} : vector<8x512xf32> to vector<8x128xf32>
    %241 = arith.negf %240 : vector<8x128xf32>
    %242 = math.exp %241 : vector<8x128xf32>
    %cst_73 = arith.constant 1.000000e+00 : f32
    %243 = vector.broadcast %cst_73 : f32 to vector<8x128xf32>
    %244 = arith.addf %243, %242 : vector<8x128xf32>
    %245 = arith.divf %243, %244 : vector<8x128xf32>
    %246 = vector.extract_strided_slice %233 {offsets = [0, 256], sizes = [8, 128], strides = [1, 1]} : vector<8x512xf32> to vector<8x128xf32>
    %247 = math.tanh %246 : vector<8x128xf32>
    %248 = vector.extract_strided_slice %233 {offsets = [0, 384], sizes = [8, 128], strides = [1, 1]} : vector<8x512xf32> to vector<8x128xf32>
    %249 = arith.negf %248 : vector<8x128xf32>
    %250 = math.exp %249 : vector<8x128xf32>
    %cst_74 = arith.constant 1.000000e+00 : f32
    %251 = vector.broadcast %cst_74 : f32 to vector<8x128xf32>
    %252 = arith.addf %251, %250 : vector<8x128xf32>
    %253 = arith.divf %251, %252 : vector<8x128xf32>
    %254 = arith.mulf %245, %224 : vector<8x128xf32>
    %255 = arith.mulf %239, %247 : vector<8x128xf32>
    %256 = arith.addf %254, %255 : vector<8x128xf32>
    %257 = math.tanh %256 : vector<8x128xf32>
    %258 = arith.mulf %253, %257 : vector<8x128xf32>
    %c7_75 = arith.constant 7 : index
    %c0_76 = arith.constant 0 : index
    %c0_77 = arith.constant 0 : index
    %259 = vector.load %arg3[%c7_75, %c0_76, %c0_77] : memref<8x8x128xf32, #tpu.memory_space<vmem>>, vector<1x8x128xf32>
    %260 = vector.shape_cast %259 : vector<1x8x128xf32> to vector<8x128xf32>
    %261 = vector.shape_cast %258 : vector<8x128xf32> to vector<1x8x128xf32>
    tpu.vector_store %arg3[%c7_75, %c0_76, %c0_77], %261 {strides = array<i32>} : memref<8x8x128xf32, #tpu.memory_space<vmem>>, vector<1x8x128xf32>,
    %c0_78 = arith.constant 0 : index
    %c0_79 = arith.constant 0 : index
    %262 = vector.load %arg4[%c0_78, %c0_79] : memref<8x128xf32, #tpu.memory_space<vmem>>, vector<8x128xf32>
    tpu.vector_store %arg4[%c0_78, %c0_79], %258 {strides = array<i32>} : memref<8x128xf32, #tpu.memory_space<vmem>>, vector<8x128xf32>,
    %c0_80 = arith.constant 0 : index
    %c0_81 = arith.constant 0 : index
    %263 = vector.load %arg5[%c0_80, %c0_81] : memref<8x128xf32, #tpu.memory_space<vmem>>, vector<8x128xf32>
    tpu.vector_store %arg5[%c0_80, %c0_81], %256 {strides = array<i32>} : memref<8x128xf32, #tpu.memory_space<vmem>>, vector<8x128xf32>,
    return
  }
  func.func @transform_0(%arg0: i32) -> (i32, i32, i32) {
    %c0_i32 = arith.constant 0 : i32
    %c0_i32_0 = arith.constant 0 : i32
    %c0_i32_1 = arith.constant 0 : i32
    return %arg0, %c0_i32, %c0_i32_0 : i32, i32, i32
  }
  func.func @transform_1(%arg0: i32) -> (i32, i32) {
    %c0_i32 = arith.constant 0 : i32
    %c0_i32_0 = arith.constant 0 : i32
    %c0_i32_1 = arith.constant 0 : i32
    return %c0_i32, %c0_i32_0 : i32, i32
  }
  func.func @transform_2(%arg0: i32) -> (i32, i32, i32) {
    %c0_i32 = arith.constant 0 : i32
    %c0_i32_0 = arith.constant 0 : i32
    %c0_i32_1 = arith.constant 0 : i32
    return %arg0, %c0_i32, %c0_i32_0 : i32, i32, i32
  }
}

</mosaic_0001>

<llo_original>
// kernel: tpu_custom_call.1
$region0: #{tpu_custom_call.1}
  #allocation0 [shape = 'u32[]', space=smem, size = 0x4, offset = 0x4, fixed_abs, tag = 'smem constant byte address 0x4 - core index']
  #allocation1 [shape = 'u32[144,128]{1,0:T(1,128)}', space=vmem, size = 0x12000, scoped, tag = 'internal scratch']
  #allocation2 [shape = 'f32[8,128]{1,0:T(8,128)}', space=vmem, size = 0x1000, scoped, tag = 'scratch operand']
  #allocation3 [shape = 'f32[8,128]{1,0:T(8,128)}', space=vmem, size = 0x1000, scoped, tag = 'scratch operand']
  %s0 = inlined_call_operand.hbm [shape: f32[8,8,512], index: 0, kind: input, shape index: {}]
  %s1 = inlined_call_operand.hbm [shape: f32[128,512], index: 1, kind: input, shape index: {}]
  %s2 = inlined_call_operand.hbm [shape: f32[8,8,128], index: 2, kind: output, shape index: {}]
  %s3 = sld [smem:[#allocation0]]
  $region30: #{tpu_custom_call.1} parent=0
    _
  %s5 = ssub.s32 1, %s3
  %s6 = scalar_select 0, %s5, %s3
  $region1: #{tpu_custom_call.1} parent=0
    #allocation4 [shape = 'u8[131072]{0}', space=vmem, size = 0x20000, scoped, tag = 'input window, operand 0, single buffered']
    #allocation5 [shape = 's32[1]{0}', space=sflag, size = 0x4, scoped, tag = 'scoped memory for tpu_custom_call.1']
    #allocation6 [shape = 's32[1]{0}', space=sflag, size = 0x4, scoped, tag = 'scoped memory for tpu_custom_call.1']
    #allocation7 [shape = 'u8[262144]{0}', space=vmem, size = 0x40000, scoped, tag = 'input window, operand 1, single buffered']
    #allocation8 [shape = 's32[1]{0}', space=sflag, size = 0x4, scoped, tag = 'scoped memory for tpu_custom_call.1']
    #allocation9 [shape = 'u8[32768]{0}', space=vmem, size = 0x8000, scoped, tag = 'output window, operand 0, single buffered']
    %7 = vsyncpa [#allocation5], 0
    %8 = vsyncpa [#allocation8], 0
    %9 = vsyncpa [#allocation6], 0
    // Predicated region
    $region2: #{tpu_custom_call.1} parent=1 // pred_check
      _
    $region3: #{tpu_custom_call.1} parent=1 // pred_check_branch
      %11 = sbr.rel (0) target = $region5
    $region4: #{tpu_custom_call.1} parent=1 // pred_region
      %s13 = ssub.s32 4096, 4096
      %14 = vsyncadd [#allocation5], %s13
      %s15 = sshll.u32 [#allocation4], 4
      %s16 = int_to_ptr.vmem [resolvable:$true] %s15
      %21 = dma.hbm_to_vmem [thread:$0]  %s0, 4096, %s16, [#allocation5], 512, 512, 32
    $region5: #{tpu_custom_call.1} parent=1 // pred_fallthru
      _
    // Predicated region
    $region6: #{tpu_custom_call.1} parent=1 // pred_check
      _
    $region7: #{tpu_custom_call.1} parent=1 // pred_check_branch
      %23 = sbr.rel (0) target = $region9
    $region8: #{tpu_custom_call.1} parent=1 // pred_region
      %s25 = ssub.s32 8192, 8192
      %26 = vsyncadd [#allocation8], %s25
      %s27 = sshll.u32 [#allocation7], 4
      %s28 = int_to_ptr.vmem [resolvable:$true] %s27
      %33 = dma.hbm_to_vmem [thread:$0]  %s1, 8192, %s28, [#allocation8], 512, 512, 32
    $region9: #{tpu_custom_call.1} parent=1 // pred_fallthru
      _
    // Predicated region
    $region10: #{tpu_custom_call.1} parent=1 // pred_check
      _
    $region11: #{tpu_custom_call.1} parent=1 // pred_check_branch
      %35 = sbr.rel (0) target = $region13
    $region12: #{tpu_custom_call.1} parent=1 // pred_region
      %36 = dma.done [#allocation5], 4096
    $region13: #{tpu_custom_call.1} parent=1 // pred_fallthru
      _
    // Predicated region
    $region14: #{tpu_custom_call.1} parent=1 // pred_check
      _
    $region15: #{tpu_custom_call.1} parent=1 // pred_check_branch
      %38 = sbr.rel (0) target = $region17
    $region16: #{tpu_custom_call.1} parent=1 // pred_region
      %39 = dma.done [#allocation8], 8192
    $region17: #{tpu_custom_call.1} parent=1 // pred_fallthru
      _
    %p40 = scmp.eq.s32.totalorder 0, 0
    // Predicated region
    $region18: #{tpu_custom_call.1} parent=1 // pred_check
      %p41 = pneg %p40
    $region19: #{tpu_custom_call.1} parent=1 // pred_check_branch
      %43 = sbr.rel (%p41) target = $region21
    $region20: #{tpu_custom_call.1} parent=1 // pred_region
      %44 = vst [vmem:[#allocation2] sm:$0xff] 0.0
      %45 = vst [vmem:[#allocation3] sm:$0xff] 0.0
    $region21: #{tpu_custom_call.1} parent=1 // pred_fallthru
      _
    %v46 = vld [vmem:[#allocation7] sm:$0xff]
    %v47 = vld [vmem:[#allocation7 + $0x8] sm:$0xff]
    %v48 = vld [vmem:[#allocation7 + $0x10] sm:$0xff]
    %v49 = vld [vmem:[#allocation7 + $0x18] sm:$0xff]
    %v50 = vld [vmem:[#allocation7 + $0x20] sm:$0xff]
    %v51 = vld [vmem:[#allocation7 + $0x28] sm:$0xff]
    %v52 = vld [vmem:[#allocation7 + $0x30] sm:$0xff]
    %v53 = vld [vmem:[#allocation7 + $0x38] sm:$0xff]
    %v54 = vld [vmem:[#allocation7 + $0x40] sm:$0xff]
    %v55 = vld [vmem:[#allocation7 + $0x48] sm:$0xff]
    %v56 = vld [vmem:[#allocation7 + $0x50] sm:$0xff]
    %v57 = vld [vmem:[#allocation7 + $0x58] sm:$0xff]
    %v58 = vld [vmem:[#allocation7 + $0x60] sm:$0xff]
    %v59 = vld [vmem:[#allocation7 + $0x68] sm:$0xff]
    %v60 = vld [vmem:[#allocation7 + $0x70] sm:$0xff]
    %v61 = vld [vmem:[#allocation7 + $0x78] sm:$0xff]
    %v62 = vld [vmem:[#allocation7 + $0x80] sm:$0xff]
    %v63 = vld [vmem:[#allocation7 + $0x88] sm:$0xff]
    %v64 = vld [vmem:[#allocation7 + $0x90] sm:$0xff]
    %v65 = vld [vmem:[#allocation7 + $0x98] sm:$0xff]
    %v66 = vld [vmem:[#allocation7 + $0xa0] sm:$0xff]
    %v67 = vld [vmem:[#allocation7 + $0xa8] sm:$0xff]
    %v68 = vld [vmem:[#allocation7 + $0xb0] sm:$0xff]
    %v69 = vld [vmem:[#allocation7 + $0xb8] sm:$0xff]
    %v70 = vld [vmem:[#allocation7 + $0xc0] sm:$0xff]
    %v71 = vld [vmem:[#allocation7 + $0xc8] sm:$0xff]
    %v72 = vld [vmem:[#allocation7 + $0xd0] sm:$0xff]
    %v73 = vld [vmem:[#allocation7 + $0xd8] sm:$0xff]
    %v74 = vld [vmem:[#allocation7 + $0xe0] sm:$0xff]
    %v75 = vld [vmem:[#allocation7 + $0xe8] sm:$0xff]
    %v76 = vld [vmem:[#allocation7 + $0xf0] sm:$0xff]
    %v77 = vld [vmem:[#allocation7 + $0xf8] sm:$0xff]
    %v78 = vld [vmem:[#allocation7 + $0x100] sm:$0xff]
    %v79 = vld [vmem:[#allocation7 + $0x108] sm:$0xff]
    %v80 = vld [vmem:[#allocation7 + $0x110] sm:$0xff]
    %v81 = vld [vmem:[#allocation7 + $0x118] sm:$0xff]
    %v82 = vld [vmem:[#allocation7 + $0x120] sm:$0xff]
    %v83 = vld [vmem:[#allocation7 + $0x128] sm:$0xff]
    %v84 = vld [vmem:[#allocation7 + $0x130] sm:$0xff]
    %v85 = vld [vmem:[#allocation7 + $0x138] sm:$0xff]
    %v86 = vld [vmem:[#allocation7 + $0x140] sm:$0xff]
    %v87 = vld [vmem:[#allocation7 + $0x148] sm:$0xff]
    %v88 = vld [vmem:[#allocation7 + $0x150] sm:$0xff]
    %v89 = vld [vmem:[#allocation7 + $0x158] sm:$0xff]
    %v90 = vld [vmem:[#allocation7 + $0x160] sm:$0xff]
    %v91 = vld [vmem:[#allocation7 + $0x168] sm:$0xff]
    %v92 = vld [vmem:[#allocation7 + $0x170] sm:$0xff]
    %v93 = vld [vmem:[#allocation7 + $0x178] sm:$0xff]
    %v94 = vld [vmem:[#allocation7 + $0x180] sm:$0xff]
    %v95 = vld [vmem:[#allocation7 + $0x188] sm:$0xff]
    %v96 = vld [vmem:[#allocation7 + $0x190] sm:$0xff]
    %v97 = vld [vmem:[#allocation7 + $0x198] sm:$0xff]
    %v98 = vld [vmem:[#allocation7 + $0x1a0] sm:$0xff]
    %v99 = vld [vmem:[#allocation7 + $0x1a8] sm:$0xff]
    %v100 = vld [vmem:[#allocation7 + $0x1b0] sm:$0xff]
    %v101 = vld [vmem:[#allocation7 + $0x1b8] sm:$0xff]
    %v102 = vld [vmem:[#allocation7 + $0x1c0] sm:$0xff]
    %v103 = vld [vmem:[#allocation7 + $0x1c8] sm:$0xff]
    %v104 = vld [vmem:[#allocation7 + $0x1d0] sm:$0xff]
    %v105 = vld [vmem:[#allocation7 + $0x1d8] sm:$0xff]
    %v106 = vld [vmem:[#allocation7 + $0x1e0] sm:$0xff]
    %v107 = vld [vmem:[#allocation7 + $0x1e8] sm:$0xff]
    %v108 = vld [vmem:[#allocation7 + $0x1f0] sm:$0xff]
    %v109 = vld [vmem:[#allocation7 + $0x1f8] sm:$0xff]
    %v110 = vld [vmem:[#allocation2] sm:$0xff]
    %v111 = vld [vmem:[#allocation3] sm:$0xff]
    %v112 = vld [vmem:[#allocation4] sm:$0xff]
    %v113 = vld [vmem:[#allocation4 + $0x8] sm:$0xff]
    %v114 = vld [vmem:[#allocation4 + $0x10] sm:$0xff]
    %v115 = vld [vmem:[#allocation4 + $0x18] sm:$0xff]
    %116 = vmatprep.subr.mxu0 %v107
    %117 = vmatpush1.msra.mxu0 %v106
    %118 = vmatprep.subr.mxu0 %v103
    %119 = vmatpush1.msra.mxu0 %v102
    %120 = vmatprep.subr.mxu0 %v99
    %121 = vmatpush1.msra.mxu0 %v98
    %122 = vmatprep.subr.mxu0 %v95
    %123 = vmatpush1.msra.mxu0 %v94
    %124 = vmatprep.subr.mxu0 %v91
    %125 = vmatpush1.msra.mxu0 %v90
    %126 = vmatprep.subr.mxu0 %v87
    %127 = vmatpush1.msra.mxu0 %v86
    %128 = vmatprep.subr.mxu0 %v83
    %129 = vmatpush1.msra.mxu0 %v82
    %130 = vmatprep.subr.mxu0 %v79
    %131 = vmatpush1.msra.mxu0 %v78
    %132 = vmatprep.subr.mxu0 %v75
    %133 = vmatpush1.msra.mxu0 %v74
    %134 = vmatprep.subr.mxu0 %v71
    %135 = vmatpush1.msra.mxu0 %v70
    %136 = vmatprep.subr.mxu0 %v67
    %137 = vmatpush1.msra.mxu0 %v66
    %138 = vmatprep.subr.mxu0 %v63
    %139 = vmatpush1.msra.mxu0 %v62
    %140 = vmatprep.subr.mxu0 %v59
    %141 = vmatpush1.msra.mxu0 %v58
    %142 = vmatprep.subr.mxu0 %v55
    %143 = vmatpush1.msra.mxu0 %v54
    %144 = vmatprep.subr.mxu0 %v51
    %145 = vmatpush1.msra.mxu0 %v50
    %146 = vmatprep.subr.mxu0 %v47
    %147 = vmatpush1.msra.mxu0 %v46
    %148 = vmatprep.subr.mxu0 0.0
    %149 = vmatpush2.msra.mxu0 0.0
    %150 = vmatprep.subr.mxu0 0.0
    %151 = vmatpush2.msra.mxu0 0.0
    %152 = vmatprep.subr.mxu0 0.0
    %153 = vmatpush2.msra.mxu0 0.0
    %154 = vmatprep.subr.mxu0 0.0
    %155 = vmatpush2.msra.mxu0 0.0
    %156 = vmatprep.subr.mxu0 0.0
    %157 = vmatpush2.msra.mxu0 0.0
    %158 = vmatprep.subr.mxu0 0.0
    %159 = vmatpush2.msra.mxu0 0.0
    %160 = vmatprep.subr.mxu0 0.0
    %161 = vmatpush2.msra.mxu0 0.0
    %162 = vmatprep.subr.mxu0 0.0
    %163 = vmatpush2.msra.mxu0 0.0
    %164 = vmatprep.subr.mxu0 0.0
    %165 = vmatpush2.msra.mxu0 0.0
    %166 = vmatprep.subr.mxu0 0.0
    %167 = vmatpush2.msra.mxu0 0.0
    %168 = vmatprep.subr.mxu0 0.0
    %169 = vmatpush2.msra.mxu0 0.0
    %170 = vmatprep.subr.mxu0 0.0
    %171 = vmatpush2.msra.mxu0 0.0
    %172 = vmatprep.subr.mxu0 0.0
    %173 = vmatpush2.msra.mxu0 0.0
    %174 = vmatprep.subr.mxu0 0.0
    %175 = vmatpush2.msra.mxu0 0.0
    %176 = vmatprep.subr.mxu0 0.0
    %177 = vmatpush2.msra.mxu0 0.0
    %178 = vmatprep.subr.mxu0 0.0
    %179 = vmatpush2.msra.mxu0 0.0
    %180 = vmatprep.mubr.f32.mxu0 0.0
    %181 = vmatmul.mubr.f32.gmra.mxu0 %v110
    %v182 = vpop.f32.mrf.mxu0
    %v183 = vadd.f32 0.0, %v182
    %v184 = vpop.f32.mrf.mxu0
    %v185 = vadd.f32 0.0, %v184
    %186 = vdwg.mxu0
    %187 = vmatprep.subr.mxu0 %v109
    %188 = vmatpush1.msra.mxu0 %v108
    %189 = vmatprep.subr.mxu0 %v105
    %190 = vmatpush1.msra.mxu0 %v104
    %191 = vmatprep.subr.mxu0 %v101
    %192 = vmatpush1.msra.mxu0 %v100
    %193 = vmatprep.subr.mxu0 %v97
    %194 = vmatpush1.msra.mxu0 %v96
    %195 = vmatprep.subr.mxu0 %v93
    %196 = vmatpush1.msra.mxu0 %v92
    %197 = vmatprep.subr.mxu0 %v89
    %198 = vmatpush1.msra.mxu0 %v88
    %199 = vmatprep.subr.mxu0 %v85
    %200 = vmatpush1.msra.mxu0 %v84
    %201 = vmatprep.subr.mxu0 %v81
    %202 = vmatpush1.msra.mxu0 %v80
    %203 = vmatprep.subr.mxu0 %v77
    %204 = vmatpush1.msra.mxu0 %v76
    %205 = vmatprep.subr.mxu0 %v73
    %206 = vmatpush1.msra.mxu0 %v72
    %207 = vmatprep.subr.mxu0 %v69
    %208 = vmatpush1.msra.mxu0 %v68
    %209 = vmatprep.subr.mxu0 %v65
    %210 = vmatpush1.msra.mxu0 %v64
    %211 = vmatprep.subr.mxu0 %v61
    %212 = vmatpush1.msra.mxu0 %v60
    %213 = vmatprep.subr.mxu0 %v57
    %214 = vmatpush1.msra.mxu0 %v56
    %215 = vmatprep.subr.mxu0 %v53
    %216 = vmatpush1.msra.mxu0 %v52
    %217 = vmatprep.subr.mxu0 %v49
    %218 = vmatpush1.msra.mxu0 %v48
    %219 = vmatprep.subr.mxu0 0.0
    %220 = vmatpush2.msra.mxu0 0.0
    %221 = vmatprep.subr.mxu0 0.0
    %222 = vmatpush2.msra.mxu0 0.0
    %223 = vmatprep.subr.mxu0 0.0
    %224 = vmatpush2.msra.mxu0 0.0
    %225 = vmatprep.subr.mxu0 0.0
    %226 = vmatpush2.msra.mxu0 0.0
    %227 = vmatprep.subr.mxu0 0.0
    %228 = vmatpush2.msra.mxu0 0.0
    %229 = vmatprep.subr.mxu0 0.0
    %230 = vmatpush2.msra.mxu0 0.0
    %231 = vmatprep.subr.mxu0 0.0
    %232 = vmatpush2.msra.mxu0 0.0
    %233 = vmatprep.subr.mxu0 0.0
    %234 = vmatpush2.msra.mxu0 0.0
    %235 = vmatprep.subr.mxu0 0.0
    %236 = vmatpush2.msra.mxu0 0.0
    %237 = vmatprep.subr.mxu0 0.0
    %238 = vmatpush2.msra.mxu0 0.0
    %239 = vmatprep.subr.mxu0 0.0
    %240 = vmatpush2.msra.mxu0 0.0
    %241 = vmatprep.subr.mxu0 0.0
    %242 = vmatpush2.msra.mxu0 0.0
    %243 = vmatprep.subr.mxu0 0.0
    %244 = vmatpush2.msra.mxu0 0.0
    %245 = vmatprep.subr.mxu0 0.0
    %246 = vmatpush2.msra.mxu0 0.0
    %247 = vmatprep.subr.mxu0 0.0
    %248 = vmatpush2.msra.mxu0 0.0
    %249 = vmatprep.subr.mxu0 0.0
    %250 = vmatpush2.msra.mxu0 0.0
    %251 = vmatprep.mubr.f32.mxu0 0.0
    %252 = vmatmul.mubr.f32.gmra.mxu0 %v110
    %v253 = vpop.f32.mrf.mxu0
    %v254 = vadd.f32 0.0, %v253
    %v255 = vpop.f32.mrf.mxu0
    %v256 = vadd.f32 0.0, %v255
    %257 = vdwg.mxu0
    %v258 = vadd.f32 %v112, %v183
    %v259 = vadd.f32 %v113, %v185
    %v260 = vadd.f32 %v114, %v254
    %v261 = vadd.f32 %v115, %v256
    %v262 = vxor.u32 %v258, 2147483648
    %v263 = vmul.f32 %v262, 1.442695
    %v264 = vpow.pop %v263
    %v265 = vadd.f32 %v264, 1.0
    %v266 = vrcp.pop %v265
    %v267 = vmul.f32 1.0, %v266
    %v268 = vxor.u32 %v259, 2147483648
    %v269 = vmul.f32 %v268, 1.442695
    %v270 = vpow.pop %v269
    %v271 = vadd.f32 %v270, 1.0
    %v272 = vrcp.pop %v271
    %v273 = vmul.f32 1.0, %v272
    %v274 = vtanh.pop %v260
    %v275 = vxor.u32 %v261, 2147483648
    %v276 = vmul.f32 %v275, 1.442695
    %v277 = vpow.pop %v276
    %v278 = vadd.f32 %v277, 1.0
    %v279 = vrcp.pop %v278
    %v280 = vmul.f32 1.0, %v279
    %v281 = vmul.f32 %v273, %v111
    %v282 = vmul.f32 %v267, %v274
    %v283 = vadd.f32 %v281, %v282
    %v284 = vtanh.pop %v283
    %v285 = vmul.f32 %v280, %v284
    %286 = vst [vmem:[#allocation9] sm:$0xff] %v285
    %s287 = scalar_lea.vmem [#allocation4], 32
    %v288 = vld [vmem:[%s287] sm:$0xff]
    %v289 = vld [vmem:[%s287 + $0x8] sm:$0xff]
    %v290 = vld [vmem:[%s287 + $0x10] sm:$0xff]
    %v291 = vld [vmem:[%s287 + $0x18] sm:$0xff]
    %292 = vmatprep.subr.mxu0 %v107
    %293 = vmatpush1.msra.mxu0 %v106
    %294 = vmatprep.subr.mxu0 %v103
    %295 = vmatpush1.msra.mxu0 %v102
    %296 = vmatprep.subr.mxu0 %v99
    %297 = vmatpush1.msra.mxu0 %v98
    %298 = vmatprep.subr.mxu0 %v95
    %299 = vmatpush1.msra.mxu0 %v94
    %300 = vmatprep.subr.mxu0 %v91
    %301 = vmatpush1.msra.mxu0 %v90
    %302 = vmatprep.subr.mxu0 %v87
    %303 = vmatpush1.msra.mxu0 %v86
    %304 = vmatprep.subr.mxu0 %v83
    %305 = vmatpush1.msra.mxu0 %v82
    %306 = vmatprep.subr.mxu0 %v79
    %307 = vmatpush1.msra.mxu0 %v78
    %308 = vmatprep.subr.mxu0 %v75
    %309 = vmatpush1.msra.mxu0 %v74
    %310 = vmatprep.subr.mxu0 %v71
    %311 = vmatpush1.msra.mxu0 %v70
    %312 = vmatprep.subr.mxu0 %v67
    %313 = vmatpush1.msra.mxu0 %v66
    %314 = vmatprep.subr.mxu0 %v63
    %315 = vmatpush1.msra.mxu0 %v62
    %316 = vmatprep.subr.mxu0 %v59
    %317 = vmatpush1.msra.mxu0 %v58
    %318 = vmatprep.subr.mxu0 %v55
    %319 = vmatpush1.msra.mxu0 %v54
    %320 = vmatprep.subr.mxu0 %v51
    %321 = vmatpush1.msra.mxu0 %v50
    %322 = vmatprep.subr.mxu0 %v47
    %323 = vmatpush1.msra.mxu0 %v46
    %324 = vmatprep.subr.mxu0 0.0
    %325 = vmatpush2.msra.mxu0 0.0
    %326 = vmatprep.subr.mxu0 0.0
    %327 = vmatpush2.msra.mxu0 0.0
    %328 = vmatprep.subr.mxu0 0.0
    %329 = vmatpush2.msra.mxu0 0.0
    %330 = vmatprep.subr.mxu0 0.0
    %331 = vmatpush2.msra.mxu0 0.0
    %332 = vmatprep.subr.mxu0 0.0
    %333 = vmatpush2.msra.mxu0 0.0
    %334 = vmatprep.subr.mxu0 0.0
    %335 = vmatpush2.msra.mxu0 0.0
    %336 = vmatprep.subr.mxu0 0.0
    %337 = vmatpush2.msra.mxu0 0.0
    %338 = vmatprep.subr.mxu0 0.0
    %339 = vmatpush2.msra.mxu0 0.0
    %340 = vmatprep.subr.mxu0 0.0
    %341 = vmatpush2.msra.mxu0 0.0
    %342 = vmatprep.subr.mxu0 0.0
    %343 = vmatpush2.msra.mxu0 0.0
    %344 = vmatprep.subr.mxu0 0.0
    %345 = vmatpush2.msra.mxu0 0.0
    %346 = vmatprep.subr.mxu0 0.0
    %347 = vmatpush2.msra.mxu0 0.0
    %348 = vmatprep.subr.mxu0 0.0
    %349 = vmatpush2.msra.mxu0 0.0
    %350 = vmatprep.subr.mxu0 0.0
    %351 = vmatpush2.msra.mxu0 0.0
    %352 = vmatprep.subr.mxu0 0.0
    %353 = vmatpush2.msra.mxu0 0.0
    %354 = vmatprep.subr.mxu0 0.0
    %355 = vmatpush2.msra.mxu0 0.0
    %356 = vmatprep.mubr.f32.mxu0 0.0
    %357 = vmatmul.mubr.f32.gmra.mxu0 %v285
    %v358 = vpop.f32.mrf.mxu0
    %v359 = vadd.f32 0.0, %v358
    %v360 = vpop.f32.mrf.mxu0
    %v361 = vadd.f32 0.0, %v360
    %362 = vdwg.mxu0
    %363 = vmatprep.subr.mxu0 %v109
    %364 = vmatpush1.msra.mxu0 %v108
    %365 = vmatprep.subr.mxu0 %v105
    %366 = vmatpush1.msra.mxu0 %v104
    %367 = vmatprep.subr.mxu0 %v101
    %368 = vmatpush1.msra.mxu0 %v100
    %369 = vmatprep.subr.mxu0 %v97
    %370 = vmatpush1.msra.mxu0 %v96
    %371 = vmatprep.subr.mxu0 %v93
    %372 = vmatpush1.msra.mxu0 %v92
    %373 = vmatprep.subr.mxu0 %v89
    %374 = vmatpush1.msra.mxu0 %v88
    %375 = vmatprep.subr.mxu0 %v85
    %376 = vmatpush1.msra.mxu0 %v84
    %377 = vmatprep.subr.mxu0 %v81
    %378 = vmatpush1.msra.mxu0 %v80
    %379 = vmatprep.subr.mxu0 %v77
    %380 = vmatpush1.msra.mxu0 %v76
    %381 = vmatprep.subr.mxu0 %v73
    %382 = vmatpush1.msra.mxu0 %v72
    %383 = vmatprep.subr.mxu0 %v69
    %384 = vmatpush1.msra.mxu0 %v68
    %385 = vmatprep.subr.mxu0 %v65
    %386 = vmatpush1.msra.mxu0 %v64
    %387 = vmatprep.subr.mxu0 %v61
    %388 = vmatpush1.msra.mxu0 %v60
    %389 = vmatprep.subr.mxu0 %v57
    %390 = vmatpush1.msra.mxu0 %v56
    %391 = vmatprep.subr.mxu0 %v53
    %392 = vmatpush1.msra.mxu0 %v52
    %393 = vmatprep.subr.mxu0 %v49
    %394 = vmatpush1.msra.mxu0 %v48
    %395 = vmatprep.subr.mxu0 0.0
    %396 = vmatpush2.msra.mxu0 0.0
    %397 = vmatprep.subr.mxu0 0.0
    %398 = vmatpush2.msra.mxu0 0.0
    %399 = vmatprep.subr.mxu0 0.0
    %400 = vmatpush2.msra.mxu0 0.0
    %401 = vmatprep.subr.mxu0 0.0
    %402 = vmatpush2.msra.mxu0 0.0
    %403 = vmatprep.subr.mxu0 0.0
    %404 = vmatpush2.msra.mxu0 0.0
    %405 = vmatprep.subr.mxu0 0.0
    %406 = vmatpush2.msra.mxu0 0.0
    %407 = vmatprep.subr.mxu0 0.0
    %408 = vmatpush2.msra.mxu0 0.0
    %409 = vmatprep.subr.mxu0 0.0
    %410 = vmatpush2.msra.mxu0 0.0
    %411 = vmatprep.subr.mxu0 0.0
    %412 = vmatpush2.msra.mxu0 0.0
    %413 = vmatprep.subr.mxu0 0.0
    %414 = vmatpush2.msra.mxu0 0.0
    %415 = vmatprep.subr.mxu0 0.0
    %416 = vmatpush2.msra.mxu0 0.0
    %417 = vmatprep.subr.mxu0 0.0
    %418 = vmatpush2.msra.mxu0 0.0
    %419 = vmatprep.subr.mxu0 0.0
    %420 = vmatpush2.msra.mxu0 0.0
    %421 = vmatprep.subr.mxu0 0.0
    %422 = vmatpush2.msra.mxu0 0.0
    %423 = vmatprep.subr.mxu0 0.0
    %424 = vmatpush2.msra.mxu0 0.0
    %425 = vmatprep.subr.mxu0 0.0
    %426 = vmatpush2.msra.mxu0 0.0
    %427 = vmatprep.mubr.f32.mxu0 0.0
    %428 = vmatmul.mubr.f32.gmra.mxu0 %v285
    %v429 = vpop.f32.mrf.mxu0
    %v430 = vadd.f32 0.0, %v429
    %v431 = vpop.f32.mrf.mxu0
    %v432 = vadd.f32 0.0, %v431
    %433 = vdwg.mxu0
    %v434 = vadd.f32 %v288, %v359
    %v435 = vadd.f32 %v289, %v361
    %v436 = vadd.f32 %v290, %v430
    %v437 = vadd.f32 %v291, %v432
    %v438 = vxor.u32 %v434, 2147483648
    %v439 = vmul.f32 %v438, 1.442695
    %v440 = vpow.pop %v439
    %v441 = vadd.f32 %v440, 1.0
    %v442 = vrcp.pop %v441
    %v443 = vmul.f32 1.0, %v442
    %v444 = vxor.u32 %v435, 2147483648
    %v445 = vmul.f32 %v444, 1.442695
    %v446 = vpow.pop %v445
    %v447 = vadd.f32 %v446, 1.0
    %v448 = vrcp.pop %v447
    %v449 = vmul.f32 1.0, %v448
    %v450 = vtanh.pop %v436
    %v451 = vxor.u32 %v437, 2147483648
    %v452 = vmul.f32 %v451, 1.442695
    %v453 = vpow.pop %v452
    %v454 = vadd.f32 %v453, 1.0
    %v455 = vrcp.pop %v454
    %v456 = vmul.f32 1.0, %v455
    %v457 = vmul.f32 %v449, %v283
    %v458 = vmul.f32 %v443, %v450
    %v459 = vadd.f32 %v457, %v458
    %v460 = vtanh.pop %v459
    %v461 = vmul.f32 %v456, %v460
    %s462 = scalar_lea.vmem [#allocation9], 8
    %463 = vst [vmem:[%s462] sm:$0xff] %v461
    %s464 = scalar_lea.vmem [#allocation4], 64
    %v465 = vld [vmem:[%s464] sm:$0xff]
    %v466 = vld [vmem:[%s464 + $0x8] sm:$0xff]
    %v467 = vld [vmem:[%s464 + $0x10] sm:$0xff]
    %v468 = vld [vmem:[%s464 + $0x18] sm:$0xff]
    %469 = vmatprep.subr.mxu0 %v107
    %470 = vmatpush1.msra.mxu0 %v106
    %471 = vmatprep.subr.mxu0 %v103
    %472 = vmatpush1.msra.mxu0 %v102
    %473 = vmatprep.subr.mxu0 %v99
    %474 = vmatpush1.msra.mxu0 %v98
    %475 = vmatprep.subr.mxu0 %v95
    %476 = vmatpush1.msra.mxu0 %v94
    %477 = vmatprep.subr.mxu0 %v91
    %478 = vmatpush1.msra.mxu0 %v90
    %479 = vmatprep.subr.mxu0 %v87
    %480 = vmatpush1.msra.mxu0 %v86
    %481 = vmatprep.subr.mxu0 %v83
    %482 = vmatpush1.msra.mxu0 %v82
    %483 = vmatprep.subr.mxu0 %v79
    %484 = vmatpush1.msra.mxu0 %v78
    %485 = vmatprep.subr.mxu0 %v75
    %486 = vmatpush1.msra.mxu0 %v74
    %487 = vmatprep.subr.mxu0 %v71
    %488 = vmatpush1.msra.mxu0 %v70
    %489 = vmatprep.subr.mxu0 %v67
    %490 = vmatpush1.msra.mxu0 %v66
    %491 = vmatprep.subr.mxu0 %v63
    %492 = vmatpush1.msra.mxu0 %v62
    %493 = vmatprep.subr.mxu0 %v59
    %494 = vmatpush1.msra.mxu0 %v58
    %495 = vmatprep.subr.mxu0 %v55
    %496 = vmatpush1.msra.mxu0 %v54
    %497 = vmatprep.subr.mxu0 %v51
    %498 = vmatpush1.msra.mxu0 %v50
    %499 = vmatprep.subr.mxu0 %v47
    %500 = vmatpush1.msra.mxu0 %v46
    %501 = vmatprep.subr.mxu0 0.0
    %502 = vmatpush2.msra.mxu0 0.0
    %503 = vmatprep.subr.mxu0 0.0
    %504 = vmatpush2.msra.mxu0 0.0
    %505 = vmatprep.subr.mxu0 0.0
    %506 = vmatpush2.msra.mxu0 0.0
    %507 = vmatprep.subr.mxu0 0.0
    %508 = vmatpush2.msra.mxu0 0.0
    %509 = vmatprep.subr.mxu0 0.0
    %510 = vmatpush2.msra.mxu0 0.0
    %511 = vmatprep.subr.mxu0 0.0
    %512 = vmatpush2.msra.mxu0 0.0
    %513 = vmatprep.subr.mxu0 0.0
    %514 = vmatpush2.msra.mxu0 0.0
    %515 = vmatprep.subr.mxu0 0.0
    %516 = vmatpush2.msra.mxu0 0.0
    %517 = vmatprep.subr.mxu0 0.0
    %518 = vmatpush2.msra.mxu0 0.0
    %519 = vmatprep.subr.mxu0 0.0
    %520 = vmatpush2.msra.mxu0 0.0
    %521 = vmatprep.subr.mxu0 0.0
    %522 = vmatpush2.msra.mxu0 0.0
    %523 = vmatprep.subr.mxu0 0.0
    %524 = vmatpush2.msra.mxu0 0.0
    %525 = vmatprep.subr.mxu0 0.0
    %526 = vmatpush2.msra.mxu0 0.0
    %527 = vmatprep.subr.mxu0 0.0
    %528 = vmatpush2.msra.mxu0 0.0
    %529 = vmatprep.subr.mxu0 0.0
    %530 = vmatpush2.msra.mxu0 0.0
    %531 = vmatprep.subr.mxu0 0.0
    %532 = vmatpush2.msra.mxu0 0.0
    %533 = vmatprep.mubr.f32.mxu0 0.0
    %534 = vmatmul.mubr.f32.gmra.mxu0 %v461
    %v535 = vpop.f32.mrf.mxu0
    %v536 = vadd.f32 0.0, %v535
    %v537 = vpop.f32.mrf.mxu0
    %v538 = vadd.f32 0.0, %v537
    %539 = vdwg.mxu0
    %540 = vmatprep.subr.mxu0 %v109
    %541 = vmatpush1.msra.mxu0 %v108
    %542 = vmatprep.subr.mxu0 %v105
    %543 = vmatpush1.msra.mxu0 %v104
    %544 = vmatprep.subr.mxu0 %v101
    %545 = vmatpush1.msra.mxu0 %v100
    %546 = vmatprep.subr.mxu0 %v97
    %547 = vmatpush1.msra.mxu0 %v96
    %548 = vmatprep.subr.mxu0 %v93
    %549 = vmatpush1.msra.mxu0 %v92
    %550 = vmatprep.subr.mxu0 %v89
    %551 = vmatpush1.msra.mxu0 %v88
    %552 = vmatprep.subr.mxu0 %v85
    %553 = vmatpush1.msra.mxu0 %v84
    %554 = vmatprep.subr.mxu0 %v81
    %555 = vmatpush1.msra.mxu0 %v80
    %556 = vmatprep.subr.mxu0 %v77
    %557 = vmatpush1.msra.mxu0 %v76
    %558 = vmatprep.subr.mxu0 %v73
    %559 = vmatpush1.msra.mxu0 %v72
    %560 = vmatprep.subr.mxu0 %v69
    %561 = vmatpush1.msra.mxu0 %v68
    %562 = vmatprep.subr.mxu0 %v65
    %563 = vmatpush1.msra.mxu0 %v64
    %564 = vmatprep.subr.mxu0 %v61
    %565 = vmatpush1.msra.mxu0 %v60
    %566 = vmatprep.subr.mxu0 %v57
    %567 = vmatpush1.msra.mxu0 %v56
    %568 = vmatprep.subr.mxu0 %v53
    %569 = vmatpush1.msra.mxu0 %v52
    %570 = vmatprep.subr.mxu0 %v49
    %571 = vmatpush1.msra.mxu0 %v48
    %572 = vmatprep.subr.mxu0 0.0
    %573 = vmatpush2.msra.mxu0 0.0
    %574 = vmatprep.subr.mxu0 0.0
    %575 = vmatpush2.msra.mxu0 0.0
    %576 = vmatprep.subr.mxu0 0.0
    %577 = vmatpush2.msra.mxu0 0.0
    %578 = vmatprep.subr.mxu0 0.0
    %579 = vmatpush2.msra.mxu0 0.0
    %580 = vmatprep.subr.mxu0 0.0
    %581 = vmatpush2.msra.mxu0 0.0
    %582 = vmatprep.subr.mxu0 0.0
    %583 = vmatpush2.msra.mxu0 0.0
    %584 = vmatprep.subr.mxu0 0.0
    %585 = vmatpush2.msra.mxu0 0.0
    %586 = vmatprep.subr.mxu0 0.0
    %587 = vmatpush2.msra.mxu0 0.0
    %588 = vmatprep.subr.mxu0 0.0
    %589 = vmatpush2.msra.mxu0 0.0
    %590 = vmatprep.subr.mxu0 0.0
    %591 = vmatpush2.msra.mxu0 0.0
    %592 = vmatprep.subr.mxu0 0.0
    %593 = vmatpush2.msra.mxu0 0.0
    %594 = vmatprep.subr.mxu0 0.0
    %595 = vmatpush2.msra.mxu0 0.0
    %596 = vmatprep.subr.mxu0 0.0
    %597 = vmatpush2.msra.mxu0 0.0
    %598 = vmatprep.subr.mxu0 0.0
    %599 = vmatpush2.msra.mxu0 0.0
    %600 = vmatprep.subr.mxu0 0.0
    %601 = vmatpush2.msra.mxu0 0.0
    %602 = vmatprep.subr.mxu0 0.0
    %603 = vmatpush2.msra.mxu0 0.0
    %604 = vmatprep.mubr.f32.mxu0 0.0
    %605 = vmatmul.mubr.f32.gmra.mxu0 %v461
    %v606 = vpop.f32.mrf.mxu0
    %v607 = vadd.f32 0.0, %v606
    %v608 = vpop.f32.mrf.mxu0
    %v609 = vadd.f32 0.0, %v608
    %610 = vdwg.mxu0
    %v611 = vadd.f32 %v465, %v536
    %v612 = vadd.f32 %v466, %v538
    %v613 = vadd.f32 %v467, %v607
    %v614 = vadd.f32 %v468, %v609
    %v615 = vxor.u32 %v611, 2147483648
    %v616 = vmul.f32 %v615, 1.442695
    %v617 = vpow.pop %v616
    %v618 = vadd.f32 %v617, 1.0
    %v619 = vrcp.pop %v618
    %v620 = vmul.f32 1.0, %v619
    %v621 = vxor.u32 %v612, 2147483648
    %v622 = vmul.f32 %v621, 1.442695
    %v623 = vpow.pop %v622
    %v624 = vadd.f32 %v623, 1.0
    %v625 = vrcp.pop %v624
    %v626 = vmul.f32 1.0, %v625
    %v627 = vtanh.pop %v613
    %v628 = vxor.u32 %v614, 2147483648
    %v629 = vmul.f32 %v628, 1.442695
    %v630 = vpow.pop %v629
    %v631 = vadd.f32 %v630, 1.0
    %v632 = vrcp.pop %v631
    %v633 = vmul.f32 1.0, %v632
    %v634 = vmul.f32 %v626, %v459
    %v635 = vmul.f32 %v620, %v627
    %v636 = vadd.f32 %v634, %v635
    %v637 = vtanh.pop %v636
    %v638 = vmul.f32 %v633, %v637
    %s639 = scalar_lea.vmem [#allocation9], 16
    %640 = vst [vmem:[%s639] sm:$0xff] %v638
    %s641 = scalar_lea.vmem [#allocation4], 96
    %v642 = vld [vmem:[%s641] sm:$0xff]
    %v643 = vld [vmem:[%s641 + $0x8] sm:$0xff]
    %v644 = vld [vmem:[%s641 + $0x10] sm:$0xff]
    %v645 = vld [vmem:[%s641 + $0x18] sm:$0xff]
    %646 = vmatprep.subr.mxu0 %v107
    %647 = vmatpush1.msra.mxu0 %v106
    %648 = vmatprep.subr.mxu0 %v103
    %649 = vmatpush1.msra.mxu0 %v102
    %650 = vmatprep.subr.mxu0 %v99
    %651 = vmatpush1.msra.mxu0 %v98
    %652 = vmatprep.subr.mxu0 %v95
    %653 = vmatpush1.msra.mxu0 %v94
    %654 = vmatprep.subr.mxu0 %v91
    %655 = vmatpush1.msra.mxu0 %v90
    %656 = vmatprep.subr.mxu0 %v87
    %657 = vmatpush1.msra.mxu0 %v86
    %658 = vmatprep.subr.mxu0 %v83
    %659 = vmatpush1.msra.mxu0 %v82
    %660 = vmatprep.subr.mxu0 %v79
    %661 = vmatpush1.msra.mxu0 %v78
    %662 = vmatprep.subr.mxu0 %v75
    %663 = vmatpush1.msra.mxu0 %v74
    %664 = vmatprep.subr.mxu0 %v71
    %665 = vmatpush1.msra.mxu0 %v70
    %666 = vmatprep.subr.mxu0 %v67
    %667 = vmatpush1.msra.mxu0 %v66
    %668 = vmatprep.subr.mxu0 %v63
    %669 = vmatpush1.msra.mxu0 %v62
    %670 = vmatprep.subr.mxu0 %v59
    %671 = vmatpush1.msra.mxu0 %v58
    %672 = vmatprep.subr.mxu0 %v55
    %673 = vmatpush1.msra.mxu0 %v54
    %674 = vmatprep.subr.mxu0 %v51
    %675 = vmatpush1.msra.mxu0 %v50
    %676 = vmatprep.subr.mxu0 %v47
    %677 = vmatpush1.msra.mxu0 %v46
    %678 = vmatprep.subr.mxu0 0.0
    %679 = vmatpush2.msra.mxu0 0.0
    %680 = vmatprep.subr.mxu0 0.0
    %681 = vmatpush2.msra.mxu0 0.0
    %682 = vmatprep.subr.mxu0 0.0
    %683 = vmatpush2.msra.mxu0 0.0
    %684 = vmatprep.subr.mxu0 0.0
    %685 = vmatpush2.msra.mxu0 0.0
    %686 = vmatprep.subr.mxu0 0.0
    %687 = vmatpush2.msra.mxu0 0.0
    %688 = vmatprep.subr.mxu0 0.0
    %689 = vmatpush2.msra.mxu0 0.0
    %690 = vmatprep.subr.mxu0 0.0
    %691 = vmatpush2.msra.mxu0 0.0
    %692 = vmatprep.subr.mxu0 0.0
    %693 = vmatpush2.msra.mxu0 0.0
    %694 = vmatprep.subr.mxu0 0.0
    %695 = vmatpush2.msra.mxu0 0.0
    %696 = vmatprep.subr.mxu0 0.0
    %697 = vmatpush2.msra.mxu0 0.0
    %698 = vmatprep.subr.mxu0 0.0
    %699 = vmatpush2.msra.mxu0 0.0
    %700 = vmatprep.subr.mxu0 0.0
    %701 = vmatpush2.msra.mxu0 0.0
    %702 = vmatprep.subr.mxu0 0.0
    %703 = vmatpush2.msra.mxu0 0.0
    %704 = vmatprep.subr.mxu0 0.0
    %705 = vmatpush2.msra.mxu0 0.0
    %706 = vmatprep.subr.mxu0 0.0
    %707 = vmatpush2.msra.mxu0 0.0
    %708 = vmatprep.subr.mxu0 0.0
    %709 = vmatpush2.msra.mxu0 0.0
    %710 = vmatprep.mubr.f32.mxu0 0.0
    %711 = vmatmul.mubr.f32.gmra.mxu0 %v638
    %v712 = vpop.f32.mrf.mxu0
    %v713 = vadd.f32 0.0, %v712
    %v714 = vpop.f32.mrf.mxu0
    %v715 = vadd.f32 0.0, %v714
    %716 = vdwg.mxu0
    %717 = vmatprep.subr.mxu0 %v109
    %718 = vmatpush1.msra.mxu0 %v108
    %719 = vmatprep.subr.mxu0 %v105
    %720 = vmatpush1.msra.mxu0 %v104
    %721 = vmatprep.subr.mxu0 %v101
    %722 = vmatpush1.msra.mxu0 %v100
    %723 = vmatprep.subr.mxu0 %v97
    %724 = vmatpush1.msra.mxu0 %v96
    %725 = vmatprep.subr.mxu0 %v93
    %726 = vmatpush1.msra.mxu0 %v92
    %727 = vmatprep.subr.mxu0 %v89
    %728 = vmatpush1.msra.mxu0 %v88
    %729 = vmatprep.subr.mxu0 %v85
    %730 = vmatpush1.msra.mxu0 %v84
    %731 = vmatprep.subr.mxu0 %v81
    %732 = vmatpush1.msra.mxu0 %v80
    %733 = vmatprep.subr.mxu0 %v77
    %734 = vmatpush1.msra.mxu0 %v76
    %735 = vmatprep.subr.mxu0 %v73
    %736 = vmatpush1.msra.mxu0 %v72
    %737 = vmatprep.subr.mxu0 %v69
    %738 = vmatpush1.msra.mxu0 %v68
    %739 = vmatprep.subr.mxu0 %v65
    %740 = vmatpush1.msra.mxu0 %v64
    %741 = vmatprep.subr.mxu0 %v61
    %742 = vmatpush1.msra.mxu0 %v60
    %743 = vmatprep.subr.mxu0 %v57
    %744 = vmatpush1.msra.mxu0 %v56
    %745 = vmatprep.subr.mxu0 %v53
    %746 = vmatpush1.msra.mxu0 %v52
    %747 = vmatprep.subr.mxu0 %v49
    %748 = vmatpush1.msra.mxu0 %v48
    %749 = vmatprep.subr.mxu0 0.0
    %750 = vmatpush2.msra.mxu0 0.0
    %751 = vmatprep.subr.mxu0 0.0
    %752 = vmatpush2.msra.mxu0 0.0
    %753 = vmatprep.subr.mxu0 0.0
    %754 = vmatpush2.msra.mxu0 0.0
    %755 = vmatprep.subr.mxu0 0.0
    %756 = vmatpush2.msra.mxu0 0.0
    %757 = vmatprep.subr.mxu0 0.0
    %758 = vmatpush2.msra.mxu0 0.0
    %759 = vmatprep.subr.mxu0 0.0
    %760 = vmatpush2.msra.mxu0 0.0
    %761 = vmatprep.subr.mxu0 0.0
    %762 = vmatpush2.msra.mxu0 0.0
    %763 = vmatprep.subr.mxu0 0.0
    %764 = vmatpush2.msra.mxu0 0.0
    %765 = vmatprep.subr.mxu0 0.0
    %766 = vmatpush2.msra.mxu0 0.0
    %767 = vmatprep.subr.mxu0 0.0
    %768 = vmatpush2.msra.mxu0 0.0
    %769 = vmatprep.subr.mxu0 0.0
    %770 = vmatpush2.msra.mxu0 0.0
    %771 = vmatprep.subr.mxu0 0.0
    %772 = vmatpush2.msra.mxu0 0.0
    %773 = vmatprep.subr.mxu0 0.0
    %774 = vmatpush2.msra.mxu0 0.0
    %775 = vmatprep.subr.mxu0 0.0
    %776 = vmatpush2.msra.mxu0 0.0
    %777 = vmatprep.subr.mxu0 0.0
    %778 = vmatpush2.msra.mxu0 0.0
    %779 = vmatprep.subr.mxu0 0.0
    %780 = vmatpush2.msra.mxu0 0.0
    %781 = vmatprep.mubr.f32.mxu0 0.0
    %782 = vmatmul.mubr.f32.gmra.mxu0 %v638
    %v783 = vpop.f32.mrf.mxu0
    %v784 = vadd.f32 0.0, %v783
    %v785 = vpop.f32.mrf.mxu0
    %v786 = vadd.f32 0.0, %v785
    %787 = vdwg.mxu0
    %v788 = vadd.f32 %v642, %v713
    %v789 = vadd.f32 %v643, %v715
    %v790 = vadd.f32 %v644, %v784
    %v791 = vadd.f32 %v645, %v786
    %v792 = vxor.u32 %v788, 2147483648
    %v793 = vmul.f32 %v792, 1.442695
    %v794 = vpow.pop %v793
    %v795 = vadd.f32 %v794, 1.0
    %v796 = vrcp.pop %v795
    %v797 = vmul.f32 1.0, %v796
    %v798 = vxor.u32 %v789, 2147483648
    %v799 = vmul.f32 %v798, 1.442695
    %v800 = vpow.pop %v799
    %v801 = vadd.f32 %v800, 1.0
    %v802 = vrcp.pop %v801
    %v803 = vmul.f32 1.0, %v802
    %v804 = vtanh.pop %v790
    %v805 = vxor.u32 %v791, 2147483648
    %v806 = vmul.f32 %v805, 1.442695
    %v807 = vpow.pop %v806
    %v808 = vadd.f32 %v807, 1.0
    %v809 = vrcp.pop %v808
    %v810 = vmul.f32 1.0, %v809
    %v811 = vmul.f32 %v803, %v636
    %v812 = vmul.f32 %v797, %v804
    %v813 = vadd.f32 %v811, %v812
    %v814 = vtanh.pop %v813
    %v815 = vmul.f32 %v810, %v814
    %s816 = scalar_lea.vmem [#allocation9], 24
    %817 = vst [vmem:[%s816] sm:$0xff] %v815
    %s818 = scalar_lea.vmem [#allocation4], 128
    %v819 = vld [vmem:[%s818] sm:$0xff]
    %v820 = vld [vmem:[%s818 + $0x8] sm:$0xff]
    %v821 = vld [vmem:[%s818 + $0x10] sm:$0xff]
    %v822 = vld [vmem:[%s818 + $0x18] sm:$0xff]
    %823 = vmatprep.subr.mxu0 %v107
    %824 = vmatpush1.msra.mxu0 %v106
    %825 = vmatprep.subr.mxu0 %v103
    %826 = vmatpush1.msra.mxu0 %v102
    %827 = vmatprep.subr.mxu0 %v99
    %828 = vmatpush1.msra.mxu0 %v98
    %829 = vmatprep.subr.mxu0 %v95
    %830 = vmatpush1.msra.mxu0 %v94
    %831 = vmatprep.subr.mxu0 %v91
    %832 = vmatpush1.msra.mxu0 %v90
    %833 = vmatprep.subr.mxu0 %v87
    %834 = vmatpush1.msra.mxu0 %v86
    %835 = vmatprep.subr.mxu0 %v83
    %836 = vmatpush1.msra.mxu0 %v82
    %837 = vmatprep.subr.mxu0 %v79
    %838 = vmatpush1.msra.mxu0 %v78
    %839 = vmatprep.subr.mxu0 %v75
    %840 = vmatpush1.msra.mxu0 %v74
    %841 = vmatprep.subr.mxu0 %v71
    %842 = vmatpush1.msra.mxu0 %v70
    %843 = vmatprep.subr.mxu0 %v67
    %844 = vmatpush1.msra.mxu0 %v66
    %845 = vmatprep.subr.mxu0 %v63
    %846 = vmatpush1.msra.mxu0 %v62
    %847 = vmatprep.subr.mxu0 %v59
    %848 = vmatpush1.msra.mxu0 %v58
    %849 = vmatprep.subr.mxu0 %v55
    %850 = vmatpush1.msra.mxu0 %v54
    %851 = vmatprep.subr.mxu0 %v51
    %852 = vmatpush1.msra.mxu0 %v50
    %853 = vmatprep.subr.mxu0 %v47
    %854 = vmatpush1.msra.mxu0 %v46
    %855 = vmatprep.subr.mxu0 0.0
    %856 = vmatpush2.msra.mxu0 0.0
    %857 = vmatprep.subr.mxu0 0.0
    %858 = vmatpush2.msra.mxu0 0.0
    %859 = vmatprep.subr.mxu0 0.0
    %860 = vmatpush2.msra.mxu0 0.0
    %861 = vmatprep.subr.mxu0 0.0
    %862 = vmatpush2.msra.mxu0 0.0
    %863 = vmatprep.subr.mxu0 0.0
    %864 = vmatpush2.msra.mxu0 0.0
    %865 = vmatprep.subr.mxu0 0.0
    %866 = vmatpush2.msra.mxu0 0.0
    %867 = vmatprep.subr.mxu0 0.0
    %868 = vmatpush2.msra.mxu0 0.0
    %869 = vmatprep.subr.mxu0 0.0
    %870 = vmatpush2.msra.mxu0 0.0
    %871 = vmatprep.subr.mxu0 0.0
    %872 = vmatpush2.msra.mxu0 0.0
    %873 = vmatprep.subr.mxu0 0.0
    %874 = vmatpush2.msra.mxu0 0.0
    %875 = vmatprep.subr.mxu0 0.0
    %876 = vmatpush2.msra.mxu0 0.0
    %877 = vmatprep.subr.mxu0 0.0
    %878 = vmatpush2.msra.mxu0 0.0
    %879 = vmatprep.subr.mxu0 0.0
    %880 = vmatpush2.msra.mxu0 0.0
    %881 = vmatprep.subr.mxu0 0.0
    %882 = vmatpush2.msra.mxu0 0.0
    %883 = vmatprep.subr.mxu0 0.0
    %884 = vmatpush2.msra.mxu0 0.0
    %885 = vmatprep.subr.mxu0 0.0
    %886 = vmatpush2.msra.mxu0 0.0
    %887 = vmatprep.mubr.f32.mxu0 0.0
    %888 = vmatmul.mubr.f32.gmra.mxu0 %v815
    %v889 = vpop.f32.mrf.mxu0
    %v890 = vadd.f32 0.0, %v889
    %v891 = vpop.f32.mrf.mxu0
    %v892 = vadd.f32 0.0, %v891
    %893 = vdwg.mxu0
    %894 = vmatprep.subr.mxu0 %v109
    %895 = vmatpush1.msra.mxu0 %v108
    %896 = vmatprep.subr.mxu0 %v105
    %897 = vmatpush1.msra.mxu0 %v104
    %898 = vmatprep.subr.mxu0 %v101
    %899 = vmatpush1.msra.mxu0 %v100
    %900 = vmatprep.subr.mxu0 %v97
    %901 = vmatpush1.msra.mxu0 %v96
    %902 = vmatprep.subr.mxu0 %v93
    %903 = vmatpush1.msra.mxu0 %v92
    %904 = vmatprep.subr.mxu0 %v89
    %905 = vmatpush1.msra.mxu0 %v88
    %906 = vmatprep.subr.mxu0 %v85
    %907 = vmatpush1.msra.mxu0 %v84
    %908 = vmatprep.subr.mxu0 %v81
    %909 = vmatpush1.msra.mxu0 %v80
    %910 = vmatprep.subr.mxu0 %v77
    %911 = vmatpush1.msra.mxu0 %v76
    %912 = vmatprep.subr.mxu0 %v73
    %913 = vmatpush1.msra.mxu0 %v72
    %914 = vmatprep.subr.mxu0 %v69
    %915 = vmatpush1.msra.mxu0 %v68
    %916 = vmatprep.subr.mxu0 %v65
    %917 = vmatpush1.msra.mxu0 %v64
    %918 = vmatprep.subr.mxu0 %v61
    %919 = vmatpush1.msra.mxu0 %v60
    %920 = vmatprep.subr.mxu0 %v57
    %921 = vmatpush1.msra.mxu0 %v56
    %922 = vmatprep.subr.mxu0 %v53
    %923 = vmatpush1.msra.mxu0 %v52
    %924 = vmatprep.subr.mxu0 %v49
    %925 = vmatpush1.msra.mxu0 %v48
    %926 = vmatprep.subr.mxu0 0.0
    %927 = vmatpush2.msra.mxu0 0.0
    %928 = vmatprep.subr.mxu0 0.0
    %929 = vmatpush2.msra.mxu0 0.0
    %930 = vmatprep.subr.mxu0 0.0
    %931 = vmatpush2.msra.mxu0 0.0
    %932 = vmatprep.subr.mxu0 0.0
    %933 = vmatpush2.msra.mxu0 0.0
    %934 = vmatprep.subr.mxu0 0.0
    %935 = vmatpush2.msra.mxu0 0.0
    %936 = vmatprep.subr.mxu0 0.0
    %937 = vmatpush2.msra.mxu0 0.0
    %938 = vmatprep.subr.mxu0 0.0
    %939 = vmatpush2.msra.mxu0 0.0
    %940 = vmatprep.subr.mxu0 0.0
    %941 = vmatpush2.msra.mxu0 0.0
    %942 = vmatprep.subr.mxu0 0.0
    %943 = vmatpush2.msra.mxu0 0.0
    %944 = vmatprep.subr.mxu0 0.0
    %945 = vmatpush2.msra.mxu0 0.0
    %946 = vmatprep.subr.mxu0 0.0
    %947 = vmatpush2.msra.mxu0 0.0
    %948 = vmatprep.subr.mxu0 0.0
    %949 = vmatpush2.msra.mxu0 0.0
    %950 = vmatprep.subr.mxu0 0.0
    %951 = vmatpush2.msra.mxu0 0.0
    %952 = vmatprep.subr.mxu0 0.0
    %953 = vmatpush2.msra.mxu0 0.0
    %954 = vmatprep.subr.mxu0 0.0
    %955 = vmatpush2.msra.mxu0 0.0
    %956 = vmatprep.subr.mxu0 0.0
    %957 = vmatpush2.msra.mxu0 0.0
    %958 = vmatprep.mubr.f32.mxu0 0.0
    %959 = vmatmul.mubr.f32.gmra.mxu0 %v815
    %v960 = vpop.f32.mrf.mxu0
    %v961 = vadd.f32 0.0, %v960
    %v962 = vpop.f32.mrf.mxu0
    %v963 = vadd.f32 0.0, %v962
    %964 = vdwg.mxu0
    %v965 = vadd.f32 %v819, %v890
    %v966 = vadd.f32 %v820, %v892
    %v967 = vadd.f32 %v821, %v961
    %v968 = vadd.f32 %v822, %v963
    %v969 = vxor.u32 %v965, 2147483648
    %v970 = vmul.f32 %v969, 1.442695
    %v971 = vpow.pop %v970
    %v972 = vadd.f32 %v971, 1.0
    %v973 = vrcp.pop %v972
    %v974 = vmul.f32 1.0, %v973
    %v975 = vxor.u32 %v966, 2147483648
    %v976 = vmul.f32 %v975, 1.442695
    %v977 = vpow.pop %v976
    %v978 = vadd.f32 %v977, 1.0
    %v979 = vrcp.pop %v978
    %v980 = vmul.f32 1.0, %v979
    %v981 = vtanh.pop %v967
    %v982 = vxor.u32 %v968, 2147483648
    %v983 = vmul.f32 %v982, 1.442695
    %v984 = vpow.pop %v983
    %v985 = vadd.f32 %v984, 1.0
    %v986 = vrcp.pop %v985
    %v987 = vmul.f32 1.0, %v986
    %v988 = vmul.f32 %v980, %v813
    %v989 = vmul.f32 %v974, %v981
    %v990 = vadd.f32 %v988, %v989
    %v991 = vtanh.pop %v990
    %v992 = vmul.f32 %v987, %v991
    %s993 = scalar_lea.vmem [#allocation9], 32
    %994 = vst [vmem:[%s993] sm:$0xff] %v992
    %s995 = scalar_lea.vmem [#allocation4], 160
    %v996 = vld [vmem:[%s995] sm:$0xff]
    %v997 = vld [vmem:[%s995 + $0x8] sm:$0xff]
    %v998 = vld [vmem:[%s995 + $0x10] sm:$0xff]
    %v999 = vld [vmem:[%s995 + $0x18] sm:$0xff]
    %1000 = vmatprep.subr.mxu0 %v107
    %1001 = vmatpush1.msra.mxu0 %v106
    %1002 = vmatprep.subr.mxu0 %v103
    %1003 = vmatpush1.msra.mxu0 %v102
    %1004 = vmatprep.subr.mxu0 %v99
    %1005 = vmatpush1.msra.mxu0 %v98
    %1006 = vmatprep.subr.mxu0 %v95
    %1007 = vmatpush1.msra.mxu0 %v94
    %1008 = vmatprep.subr.mxu0 %v91
    %1009 = vmatpush1.msra.mxu0 %v90
    %1010 = vmatprep.subr.mxu0 %v87
    %1011 = vmatpush1.msra.mxu0 %v86
    %1012 = vmatprep.subr.mxu0 %v83
    %1013 = vmatpush1.msra.mxu0 %v82
    %1014 = vmatprep.subr.mxu0 %v79
    %1015 = vmatpush1.msra.mxu0 %v78
    %1016 = vmatprep.subr.mxu0 %v75
    %1017 = vmatpush1.msra.mxu0 %v74
    %1018 = vmatprep.subr.mxu0 %v71
    %1019 = vmatpush1.msra.mxu0 %v70
    %1020 = vmatprep.subr.mxu0 %v67
    %1021 = vmatpush1.msra.mxu0 %v66
    %1022 = vmatprep.subr.mxu0 %v63
    %1023 = vmatpush1.msra.mxu0 %v62
    %1024 = vmatprep.subr.mxu0 %v59
    %1025 = vmatpush1.msra.mxu0 %v58
    %1026 = vmatprep.subr.mxu0 %v55
    %1027 = vmatpush1.msra.mxu0 %v54
    %1028 = vmatprep.subr.mxu0 %v51
    %1029 = vmatpush1.msra.mxu0 %v50
    %1030 = vmatprep.subr.mxu0 %v47
    %1031 = vmatpush1.msra.mxu0 %v46
    %1032 = vmatprep.subr.mxu0 0.0
    %1033 = vmatpush2.msra.mxu0 0.0
    %1034 = vmatprep.subr.mxu0 0.0
    %1035 = vmatpush2.msra.mxu0 0.0
    %1036 = vmatprep.subr.mxu0 0.0
    %1037 = vmatpush2.msra.mxu0 0.0
    %1038 = vmatprep.subr.mxu0 0.0
    %1039 = vmatpush2.msra.mxu0 0.0
    %1040 = vmatprep.subr.mxu0 0.0
    %1041 = vmatpush2.msra.mxu0 0.0
    %1042 = vmatprep.subr.mxu0 0.0
    %1043 = vmatpush2.msra.mxu0 0.0
    %1044 = vmatprep.subr.mxu0 0.0
    %1045 = vmatpush2.msra.mxu0 0.0
    %1046 = vmatprep.subr.mxu0 0.0
    %1047 = vmatpush2.msra.mxu0 0.0
    %1048 = vmatprep.subr.mxu0 0.0
    %1049 = vmatpush2.msra.mxu0 0.0
    %1050 = vmatprep.subr.mxu0 0.0
    %1051 = vmatpush2.msra.mxu0 0.0
    %1052 = vmatprep.subr.mxu0 0.0
    %1053 = vmatpush2.msra.mxu0 0.0
    %1054 = vmatprep.subr.mxu0 0.0
    %1055 = vmatpush2.msra.mxu0 0.0
    %1056 = vmatprep.subr.mxu0 0.0
    %1057 = vmatpush2.msra.mxu0 0.0
    %1058 = vmatprep.subr.mxu0 0.0
    %1059 = vmatpush2.msra.mxu0 0.0
    %1060 = vmatprep.subr.mxu0 0.0
    %1061 = vmatpush2.msra.mxu0 0.0
    %1062 = vmatprep.subr.mxu0 0.0
    %1063 = vmatpush2.msra.mxu0 0.0
    %1064 = vmatprep.mubr.f32.mxu0 0.0
    %1065 = vmatmul.mubr.f32.gmra.mxu0 %v992
    %v1066 = vpop.f32.mrf.mxu0
    %v1067 = vadd.f32 0.0, %v1066
    %v1068 = vpop.f32.mrf.mxu0
    %v1069 = vadd.f32 0.0, %v1068
    %1070 = vdwg.mxu0
    %1071 = vmatprep.subr.mxu0 %v109
    %1072 = vmatpush1.msra.mxu0 %v108
    %1073 = vmatprep.subr.mxu0 %v105
    %1074 = vmatpush1.msra.mxu0 %v104
    %1075 = vmatprep.subr.mxu0 %v101
    %1076 = vmatpush1.msra.mxu0 %v100
    %1077 = vmatprep.subr.mxu0 %v97
    %1078 = vmatpush1.msra.mxu0 %v96
    %1079 = vmatprep.subr.mxu0 %v93
    %1080 = vmatpush1.msra.mxu0 %v92
    %1081 = vmatprep.subr.mxu0 %v89
    %1082 = vmatpush1.msra.mxu0 %v88
    %1083 = vmatprep.subr.mxu0 %v85
    %1084 = vmatpush1.msra.mxu0 %v84
    %1085 = vmatprep.subr.mxu0 %v81
    %1086 = vmatpush1.msra.mxu0 %v80
    %1087 = vmatprep.subr.mxu0 %v77
    %1088 = vmatpush1.msra.mxu0 %v76
    %1089 = vmatprep.subr.mxu0 %v73
    %1090 = vmatpush1.msra.mxu0 %v72
    %1091 = vmatprep.subr.mxu0 %v69
    %1092 = vmatpush1.msra.mxu0 %v68
    %1093 = vmatprep.subr.mxu0 %v65
    %1094 = vmatpush1.msra.mxu0 %v64
    %1095 = vmatprep.subr.mxu0 %v61
    %1096 = vmatpush1.msra.mxu0 %v60
    %1097 = vmatprep.subr.mxu0 %v57
    %1098 = vmatpush1.msra.mxu0 %v56
    %1099 = vmatprep.subr.mxu0 %v53
    %1100 = vmatpush1.msra.mxu0 %v52
    %1101 = vmatprep.subr.mxu0 %v49
    %1102 = vmatpush1.msra.mxu0 %v48
    %1103 = vmatprep.subr.mxu0 0.0
    %1104 = vmatpush2.msra.mxu0 0.0
    %1105 = vmatprep.subr.mxu0 0.0
    %1106 = vmatpush2.msra.mxu0 0.0
    %1107 = vmatprep.subr.mxu0 0.0
    %1108 = vmatpush2.msra.mxu0 0.0
    %1109 = vmatprep.subr.mxu0 0.0
    %1110 = vmatpush2.msra.mxu0 0.0
    %1111 = vmatprep.subr.mxu0 0.0
    %1112 = vmatpush2.msra.mxu0 0.0
    %1113 = vmatprep.subr.mxu0 0.0
    %1114 = vmatpush2.msra.mxu0 0.0
    %1115 = vmatprep.subr.mxu0 0.0
    %1116 = vmatpush2.msra.mxu0 0.0
    %1117 = vmatprep.subr.mxu0 0.0
    %1118 = vmatpush2.msra.mxu0 0.0
    %1119 = vmatprep.subr.mxu0 0.0
    %1120 = vmatpush2.msra.mxu0 0.0
    %1121 = vmatprep.subr.mxu0 0.0
    %1122 = vmatpush2.msra.mxu0 0.0
    %1123 = vmatprep.subr.mxu0 0.0
    %1124 = vmatpush2.msra.mxu0 0.0
    %1125 = vmatprep.subr.mxu0 0.0
    %1126 = vmatpush2.msra.mxu0 0.0
    %1127 = vmatprep.subr.mxu0 0.0
    %1128 = vmatpush2.msra.mxu0 0.0
    %1129 = vmatprep.subr.mxu0 0.0
    %1130 = vmatpush2.msra.mxu0 0.0
    %1131 = vmatprep.subr.mxu0 0.0
    %1132 = vmatpush2.msra.mxu0 0.0
    %1133 = vmatprep.subr.mxu0 0.0
    %1134 = vmatpush2.msra.mxu0 0.0
    %1135 = vmatprep.mubr.f32.mxu0 0.0
    %1136 = vmatmul.mubr.f32.gmra.mxu0 %v992
    %v1137 = vpop.f32.mrf.mxu0
    %v1138 = vadd.f32 0.0, %v1137
    %v1139 = vpop.f32.mrf.mxu0
    %v1140 = vadd.f32 0.0, %v1139
    %1141 = vdwg.mxu0
    %v1142 = vadd.f32 %v996, %v1067
    %v1143 = vadd.f32 %v997, %v1069
    %v1144 = vadd.f32 %v998, %v1138
    %v1145 = vadd.f32 %v999, %v1140
    %v1146 = vxor.u32 %v1142, 2147483648
    %v1147 = vmul.f32 %v1146, 1.442695
    %v1148 = vpow.pop %v1147
    %v1149 = vadd.f32 %v1148, 1.0
    %v1150 = vrcp.pop %v1149
    %v1151 = vmul.f32 1.0, %v1150
    %v1152 = vxor.u32 %v1143, 2147483648
    %v1153 = vmul.f32 %v1152, 1.442695
    %v1154 = vpow.pop %v1153
    %v1155 = vadd.f32 %v1154, 1.0
    %v1156 = vrcp.pop %v1155
    %v1157 = vmul.f32 1.0, %v1156
    %v1158 = vtanh.pop %v1144
    %v1159 = vxor.u32 %v1145, 2147483648
    %v1160 = vmul.f32 %v1159, 1.442695
    %v1161 = vpow.pop %v1160
    %v1162 = vadd.f32 %v1161, 1.0
    %v1163 = vrcp.pop %v1162
    %v1164 = vmul.f32 1.0, %v1163
    %v1165 = vmul.f32 %v1157, %v990
    %v1166 = vmul.f32 %v1151, %v1158
    %v1167 = vadd.f32 %v1165, %v1166
    %v1168 = vtanh.pop %v1167
    %v1169 = vmul.f32 %v1164, %v1168
    %s1170 = scalar_lea.vmem [#allocation9], 40
    %1171 = vst [vmem:[%s1170] sm:$0xff] %v1169
    %s1172 = scalar_lea.vmem [#allocation4], 192
    %v1173 = vld [vmem:[%s1172] sm:$0xff]
    %v1174 = vld [vmem:[%s1172 + $0x8] sm:$0xff]
    %v1175 = vld [vmem:[%s1172 + $0x10] sm:$0xff]
    %v1176 = vld [vmem:[%s1172 + $0x18] sm:$0xff]
    %1177 = vmatprep.subr.mxu0 %v107
    %1178 = vmatpush1.msra.mxu0 %v106
    %1179 = vmatprep.subr.mxu0 %v103
    %1180 = vmatpush1.msra.mxu0 %v102
    %1181 = vmatprep.subr.mxu0 %v99
    %1182 = vmatpush1.msra.mxu0 %v98
    %1183 = vmatprep.subr.mxu0 %v95
    %1184 = vmatpush1.msra.mxu0 %v94
    %1185 = vmatprep.subr.mxu0 %v91
    %1186 = vmatpush1.msra.mxu0 %v90
    %1187 = vmatprep.subr.mxu0 %v87
    %1188 = vmatpush1.msra.mxu0 %v86
    %1189 = vmatprep.subr.mxu0 %v83
    %1190 = vmatpush1.msra.mxu0 %v82
    %1191 = vmatprep.subr.mxu0 %v79
    %1192 = vmatpush1.msra.mxu0 %v78
    %1193 = vmatprep.subr.mxu0 %v75
    %1194 = vmatpush1.msra.mxu0 %v74
    %1195 = vmatprep.subr.mxu0 %v71
    %1196 = vmatpush1.msra.mxu0 %v70
    %1197 = vmatprep.subr.mxu0 %v67
    %1198 = vmatpush1.msra.mxu0 %v66
    %1199 = vmatprep.subr.mxu0 %v63
    %1200 = vmatpush1.msra.mxu0 %v62
    %1201 = vmatprep.subr.mxu0 %v59
    %1202 = vmatpush1.msra.mxu0 %v58
    %1203 = vmatprep.subr.mxu0 %v55
    %1204 = vmatpush1.msra.mxu0 %v54
    %1205 = vmatprep.subr.mxu0 %v51
    %1206 = vmatpush1.msra.mxu0 %v50
    %1207 = vmatprep.subr.mxu0 %v47
    %1208 = vmatpush1.msra.mxu0 %v46
    %1209 = vmatprep.subr.mxu0 0.0
    %1210 = vmatpush2.msra.mxu0 0.0
    %1211 = vmatprep.subr.mxu0 0.0
    %1212 = vmatpush2.msra.mxu0 0.0
    %1213 = vmatprep.subr.mxu0 0.0
    %1214 = vmatpush2.msra.mxu0 0.0
    %1215 = vmatprep.subr.mxu0 0.0
    %1216 = vmatpush2.msra.mxu0 0.0
    %1217 = vmatprep.subr.mxu0 0.0
    %1218 = vmatpush2.msra.mxu0 0.0
    %1219 = vmatprep.subr.mxu0 0.0
    %1220 = vmatpush2.msra.mxu0 0.0
    %1221 = vmatprep.subr.mxu0 0.0
    %1222 = vmatpush2.msra.mxu0 0.0
    %1223 = vmatprep.subr.mxu0 0.0
    %1224 = vmatpush2.msra.mxu0 0.0
    %1225 = vmatprep.subr.mxu0 0.0
    %1226 = vmatpush2.msra.mxu0 0.0
    %1227 = vmatprep.subr.mxu0 0.0
    %1228 = vmatpush2.msra.mxu0 0.0
    %1229 = vmatprep.subr.mxu0 0.0
    %1230 = vmatpush2.msra.mxu0 0.0
    %1231 = vmatprep.subr.mxu0 0.0
    %1232 = vmatpush2.msra.mxu0 0.0
    %1233 = vmatprep.subr.mxu0 0.0
    %1234 = vmatpush2.msra.mxu0 0.0
    %1235 = vmatprep.subr.mxu0 0.0
    %1236 = vmatpush2.msra.mxu0 0.0
    %1237 = vmatprep.subr.mxu0 0.0
    %1238 = vmatpush2.msra.mxu0 0.0
    %1239 = vmatprep.subr.mxu0 0.0
    %1240 = vmatpush2.msra.mxu0 0.0
    %1241 = vmatprep.mubr.f32.mxu0 0.0
    %1242 = vmatmul.mubr.f32.gmra.mxu0 %v1169
    %v1243 = vpop.f32.mrf.mxu0
    %v1244 = vadd.f32 0.0, %v1243
    %v1245 = vpop.f32.mrf.mxu0
    %v1246 = vadd.f32 0.0, %v1245
    %1247 = vdwg.mxu0
    %1248 = vmatprep.subr.mxu0 %v109
    %1249 = vmatpush1.msra.mxu0 %v108
    %1250 = vmatprep.subr.mxu0 %v105
    %1251 = vmatpush1.msra.mxu0 %v104
    %1252 = vmatprep.subr.mxu0 %v101
    %1253 = vmatpush1.msra.mxu0 %v100
    %1254 = vmatprep.subr.mxu0 %v97
    %1255 = vmatpush1.msra.mxu0 %v96
    %1256 = vmatprep.subr.mxu0 %v93
    %1257 = vmatpush1.msra.mxu0 %v92
    %1258 = vmatprep.subr.mxu0 %v89
    %1259 = vmatpush1.msra.mxu0 %v88
    %1260 = vmatprep.subr.mxu0 %v85
    %1261 = vmatpush1.msra.mxu0 %v84
    %1262 = vmatprep.subr.mxu0 %v81
    %1263 = vmatpush1.msra.mxu0 %v80
    %1264 = vmatprep.subr.mxu0 %v77
    %1265 = vmatpush1.msra.mxu0 %v76
    %1266 = vmatprep.subr.mxu0 %v73
    %1267 = vmatpush1.msra.mxu0 %v72
    %1268 = vmatprep.subr.mxu0 %v69
    %1269 = vmatpush1.msra.mxu0 %v68
    %1270 = vmatprep.subr.mxu0 %v65
    %1271 = vmatpush1.msra.mxu0 %v64
    %1272 = vmatprep.subr.mxu0 %v61
    %1273 = vmatpush1.msra.mxu0 %v60
    %1274 = vmatprep.subr.mxu0 %v57
    %1275 = vmatpush1.msra.mxu0 %v56
    %1276 = vmatprep.subr.mxu0 %v53
    %1277 = vmatpush1.msra.mxu0 %v52
    %1278 = vmatprep.subr.mxu0 %v49
    %1279 = vmatpush1.msra.mxu0 %v48
    %1280 = vmatprep.subr.mxu0 0.0
    %1281 = vmatpush2.msra.mxu0 0.0
    %1282 = vmatprep.subr.mxu0 0.0
    %1283 = vmatpush2.msra.mxu0 0.0
    %1284 = vmatprep.subr.mxu0 0.0
    %1285 = vmatpush2.msra.mxu0 0.0
    %1286 = vmatprep.subr.mxu0 0.0
    %1287 = vmatpush2.msra.mxu0 0.0
    %1288 = vmatprep.subr.mxu0 0.0
    %1289 = vmatpush2.msra.mxu0 0.0
    %1290 = vmatprep.subr.mxu0 0.0
    %1291 = vmatpush2.msra.mxu0 0.0
    %1292 = vmatprep.subr.mxu0 0.0
    %1293 = vmatpush2.msra.mxu0 0.0
    %1294 = vmatprep.subr.mxu0 0.0
    %1295 = vmatpush2.msra.mxu0 0.0
    %1296 = vmatprep.subr.mxu0 0.0
    %1297 = vmatpush2.msra.mxu0 0.0
    %1298 = vmatprep.subr.mxu0 0.0
    %1299 = vmatpush2.msra.mxu0 0.0
    %1300 = vmatprep.subr.mxu0 0.0
    %1301 = vmatpush2.msra.mxu0 0.0
    %1302 = vmatprep.subr.mxu0 0.0
    %1303 = vmatpush2.msra.mxu0 0.0
    %1304 = vmatprep.subr.mxu0 0.0
    %1305 = vmatpush2.msra.mxu0 0.0
    %1306 = vmatprep.subr.mxu0 0.0
    %1307 = vmatpush2.msra.mxu0 0.0
    %1308 = vmatprep.subr.mxu0 0.0
    %1309 = vmatpush2.msra.mxu0 0.0
    %1310 = vmatprep.subr.mxu0 0.0
    %1311 = vmatpush2.msra.mxu0 0.0
    %1312 = vmatprep.mubr.f32.mxu0 0.0
    %1313 = vmatmul.mubr.f32.gmra.mxu0 %v1169
    %v1314 = vpop.f32.mrf.mxu0
    %v1315 = vadd.f32 0.0, %v1314
    %v1316 = vpop.f32.mrf.mxu0
    %v1317 = vadd.f32 0.0, %v1316
    %1318 = vdwg.mxu0
    %v1319 = vadd.f32 %v1173, %v1244
    %v1320 = vadd.f32 %v1174, %v1246
    %v1321 = vadd.f32 %v1175, %v1315
    %v1322 = vadd.f32 %v1176, %v1317
    %v1323 = vxor.u32 %v1319, 2147483648
    %v1324 = vmul.f32 %v1323, 1.442695
    %v1325 = vpow.pop %v1324
    %v1326 = vadd.f32 %v1325, 1.0
    %v1327 = vrcp.pop %v1326
    %v1328 = vmul.f32 1.0, %v1327
    %v1329 = vxor.u32 %v1320, 2147483648
    %v1330 = vmul.f32 %v1329, 1.442695
    %v1331 = vpow.pop %v1330
    %v1332 = vadd.f32 %v1331, 1.0
    %v1333 = vrcp.pop %v1332
    %v1334 = vmul.f32 1.0, %v1333
    %v1335 = vtanh.pop %v1321
    %v1336 = vxor.u32 %v1322, 2147483648
    %v1337 = vmul.f32 %v1336, 1.442695
    %v1338 = vpow.pop %v1337
    %v1339 = vadd.f32 %v1338, 1.0
    %v1340 = vrcp.pop %v1339
    %v1341 = vmul.f32 1.0, %v1340
    %v1342 = vmul.f32 %v1334, %v1167
    %v1343 = vmul.f32 %v1328, %v1335
    %v1344 = vadd.f32 %v1342, %v1343
    %v1345 = vtanh.pop %v1344
    %v1346 = vmul.f32 %v1341, %v1345
    %s1347 = scalar_lea.vmem [#allocation9], 48
    %1348 = vst [vmem:[%s1347] sm:$0xff] %v1346
    %s1349 = scalar_lea.vmem [#allocation4], 224
    %v1350 = vld [vmem:[%s1349] sm:$0xff]
    %v1351 = vld [vmem:[%s1349 + $0x8] sm:$0xff]
    %v1352 = vld [vmem:[%s1349 + $0x10] sm:$0xff]
    %v1353 = vld [vmem:[%s1349 + $0x18] sm:$0xff]
    %1354 = vmatprep.subr.mxu0 %v107
    %1355 = vmatpush1.msra.mxu0 %v106
    %1356 = vmatprep.subr.mxu0 %v103
    %1357 = vmatpush1.msra.mxu0 %v102
    %1358 = vmatprep.subr.mxu0 %v99
    %1359 = vmatpush1.msra.mxu0 %v98
    %1360 = vmatprep.subr.mxu0 %v95
    %1361 = vmatpush1.msra.mxu0 %v94
    %1362 = vmatprep.subr.mxu0 %v91
    %1363 = vmatpush1.msra.mxu0 %v90
    %1364 = vmatprep.subr.mxu0 %v87
    %1365 = vmatpush1.msra.mxu0 %v86
    %1366 = vmatprep.subr.mxu0 %v83
    %1367 = vmatpush1.msra.mxu0 %v82
    %1368 = vmatprep.subr.mxu0 %v79
    %1369 = vmatpush1.msra.mxu0 %v78
    %1370 = vmatprep.subr.mxu0 %v75
    %1371 = vmatpush1.msra.mxu0 %v74
    %1372 = vmatprep.subr.mxu0 %v71
    %1373 = vmatpush1.msra.mxu0 %v70
    %1374 = vmatprep.subr.mxu0 %v67
    %1375 = vmatpush1.msra.mxu0 %v66
    %1376 = vmatprep.subr.mxu0 %v63
    %1377 = vmatpush1.msra.mxu0 %v62
    %1378 = vmatprep.subr.mxu0 %v59
    %1379 = vmatpush1.msra.mxu0 %v58
    %1380 = vmatprep.subr.mxu0 %v55
    %1381 = vmatpush1.msra.mxu0 %v54
    %1382 = vmatprep.subr.mxu0 %v51
    %1383 = vmatpush1.msra.mxu0 %v50
    %1384 = vmatprep.subr.mxu0 %v47
    %1385 = vmatpush1.msra.mxu0 %v46
    %1386 = vmatprep.subr.mxu0 0.0
    %1387 = vmatpush2.msra.mxu0 0.0
    %1388 = vmatprep.subr.mxu0 0.0
    %1389 = vmatpush2.msra.mxu0 0.0
    %1390 = vmatprep.subr.mxu0 0.0
    %1391 = vmatpush2.msra.mxu0 0.0
    %1392 = vmatprep.subr.mxu0 0.0
    %1393 = vmatpush2.msra.mxu0 0.0
    %1394 = vmatprep.subr.mxu0 0.0
    %1395 = vmatpush2.msra.mxu0 0.0
    %1396 = vmatprep.subr.mxu0 0.0
    %1397 = vmatpush2.msra.mxu0 0.0
    %1398 = vmatprep.subr.mxu0 0.0
    %1399 = vmatpush2.msra.mxu0 0.0
    %1400 = vmatprep.subr.mxu0 0.0
    %1401 = vmatpush2.msra.mxu0 0.0
    %1402 = vmatprep.subr.mxu0 0.0
    %1403 = vmatpush2.msra.mxu0 0.0
    %1404 = vmatprep.subr.mxu0 0.0
    %1405 = vmatpush2.msra.mxu0 0.0
    %1406 = vmatprep.subr.mxu0 0.0
    %1407 = vmatpush2.msra.mxu0 0.0
    %1408 = vmatprep.subr.mxu0 0.0
    %1409 = vmatpush2.msra.mxu0 0.0
    %1410 = vmatprep.subr.mxu0 0.0
    %1411 = vmatpush2.msra.mxu0 0.0
    %1412 = vmatprep.subr.mxu0 0.0
    %1413 = vmatpush2.msra.mxu0 0.0
    %1414 = vmatprep.subr.mxu0 0.0
    %1415 = vmatpush2.msra.mxu0 0.0
    %1416 = vmatprep.subr.mxu0 0.0
    %1417 = vmatpush2.msra.mxu0 0.0
    %1418 = vmatprep.mubr.f32.mxu0 0.0
    %1419 = vmatmul.mubr.f32.gmra.mxu0 %v1346
    %v1420 = vpop.f32.mrf.mxu0
    %v1421 = vadd.f32 0.0, %v1420
    %v1422 = vpop.f32.mrf.mxu0
    %v1423 = vadd.f32 0.0, %v1422
    %1424 = vdwg.mxu0
    %1425 = vmatprep.subr.mxu0 %v109
    %1426 = vmatpush1.msra.mxu0 %v108
    %1427 = vmatprep.subr.mxu0 %v105
    %1428 = vmatpush1.msra.mxu0 %v104
    %1429 = vmatprep.subr.mxu0 %v101
    %1430 = vmatpush1.msra.mxu0 %v100
    %1431 = vmatprep.subr.mxu0 %v97
    %1432 = vmatpush1.msra.mxu0 %v96
    %1433 = vmatprep.subr.mxu0 %v93
    %1434 = vmatpush1.msra.mxu0 %v92
    %1435 = vmatprep.subr.mxu0 %v89
    %1436 = vmatpush1.msra.mxu0 %v88
    %1437 = vmatprep.subr.mxu0 %v85
    %1438 = vmatpush1.msra.mxu0 %v84
    %1439 = vmatprep.subr.mxu0 %v81
    %1440 = vmatpush1.msra.mxu0 %v80
    %1441 = vmatprep.subr.mxu0 %v77
    %1442 = vmatpush1.msra.mxu0 %v76
    %1443 = vmatprep.subr.mxu0 %v73
    %1444 = vmatpush1.msra.mxu0 %v72
    %1445 = vmatprep.subr.mxu0 %v69
    %1446 = vmatpush1.msra.mxu0 %v68
    %1447 = vmatprep.subr.mxu0 %v65
    %1448 = vmatpush1.msra.mxu0 %v64
    %1449 = vmatprep.subr.mxu0 %v61
    %1450 = vmatpush1.msra.mxu0 %v60
    %1451 = vmatprep.subr.mxu0 %v57
    %1452 = vmatpush1.msra.mxu0 %v56
    %1453 = vmatprep.subr.mxu0 %v53
    %1454 = vmatpush1.msra.mxu0 %v52
    %1455 = vmatprep.subr.mxu0 %v49
    %1456 = vmatpush1.msra.mxu0 %v48
    %1457 = vmatprep.subr.mxu0 0.0
    %1458 = vmatpush2.msra.mxu0 0.0
    %1459 = vmatprep.subr.mxu0 0.0
    %1460 = vmatpush2.msra.mxu0 0.0
    %1461 = vmatprep.subr.mxu0 0.0
    %1462 = vmatpush2.msra.mxu0 0.0
    %1463 = vmatprep.subr.mxu0 0.0
    %1464 = vmatpush2.msra.mxu0 0.0
    %1465 = vmatprep.subr.mxu0 0.0
    %1466 = vmatpush2.msra.mxu0 0.0
    %1467 = vmatprep.subr.mxu0 0.0
    %1468 = vmatpush2.msra.mxu0 0.0
    %1469 = vmatprep.subr.mxu0 0.0
    %1470 = vmatpush2.msra.mxu0 0.0
    %1471 = vmatprep.subr.mxu0 0.0
    %1472 = vmatpush2.msra.mxu0 0.0
    %1473 = vmatprep.subr.mxu0 0.0
    %1474 = vmatpush2.msra.mxu0 0.0
    %1475 = vmatprep.subr.mxu0 0.0
    %1476 = vmatpush2.msra.mxu0 0.0
    %1477 = vmatprep.subr.mxu0 0.0
    %1478 = vmatpush2.msra.mxu0 0.0
    %1479 = vmatprep.subr.mxu0 0.0
    %1480 = vmatpush2.msra.mxu0 0.0
    %1481 = vmatprep.subr.mxu0 0.0
    %1482 = vmatpush2.msra.mxu0 0.0
    %1483 = vmatprep.subr.mxu0 0.0
    %1484 = vmatpush2.msra.mxu0 0.0
    %1485 = vmatprep.subr.mxu0 0.0
    %1486 = vmatpush2.msra.mxu0 0.0
    %1487 = vmatprep.subr.mxu0 0.0
    %1488 = vmatpush2.msra.mxu0 0.0
    %1489 = vmatprep.mubr.f32.mxu0 0.0
    %1490 = vmatmul.mubr.f32.gmra.mxu0 %v1346
    %v1491 = vpop.f32.mrf.mxu0
    %v1492 = vadd.f32 0.0, %v1491
    %v1493 = vpop.f32.mrf.mxu0
    %v1494 = vadd.f32 0.0, %v1493
    %1495 = vdwg.mxu0
    %v1496 = vadd.f32 %v1350, %v1421
    %v1497 = vadd.f32 %v1351, %v1423
    %v1498 = vadd.f32 %v1352, %v1492
    %v1499 = vadd.f32 %v1353, %v1494
    %v1500 = vxor.u32 %v1496, 2147483648
    %v1501 = vmul.f32 %v1500, 1.442695
    %v1502 = vpow.pop %v1501
    %v1503 = vadd.f32 %v1502, 1.0
    %v1504 = vrcp.pop %v1503
    %v1505 = vmul.f32 1.0, %v1504
    %v1506 = vxor.u32 %v1497, 2147483648
    %v1507 = vmul.f32 %v1506, 1.442695
    %v1508 = vpow.pop %v1507
    %v1509 = vadd.f32 %v1508, 1.0
    %v1510 = vrcp.pop %v1509
    %v1511 = vmul.f32 1.0, %v1510
    %v1512 = vtanh.pop %v1498
    %v1513 = vxor.u32 %v1499, 2147483648
    %v1514 = vmul.f32 %v1513, 1.442695
    %v1515 = vpow.pop %v1514
    %v1516 = vadd.f32 %v1515, 1.0
    %v1517 = vrcp.pop %v1516
    %v1518 = vmul.f32 1.0, %v1517
    %v1519 = vmul.f32 %v1511, %v1344
    %v1520 = vmul.f32 %v1505, %v1512
    %v1521 = vadd.f32 %v1519, %v1520
    %v1522 = vtanh.pop %v1521
    %v1523 = vmul.f32 %v1518, %v1522
    %s1524 = scalar_lea.vmem [#allocation9], 56
    %1525 = vst [vmem:[%s1524] sm:$0xff] %v1523
    %1526 = vst [vmem:[#allocation2] sm:$0xff] %v1523
    %1527 = vst [vmem:[#allocation3] sm:$0xff] %v1521
    // Predicated region
    $region22: #{tpu_custom_call.1} parent=1 // pred_check
      _
    $region23: #{tpu_custom_call.1} parent=1 // pred_check_branch
      %1529 = sbr.rel (0) target = $region25
    $region24: #{tpu_custom_call.1} parent=1 // pred_region
      %s1531 = ssub.s32 1024, 1024
      %1532 = vsyncadd [#allocation6], %s1531
      %s1533 = sshll.u32 [#allocation9], 4
      %s1534 = int_to_ptr.vmem [resolvable:$true] %s1533
      %1539 = dma.vmem_to_hbm [thread:$0]  %s1534, 1024, %s2, [#allocation6], 128, 128, 8
    $region25: #{tpu_custom_call.1} parent=1 // pred_fallthru
      _
    // Predicated region
    $region26: #{tpu_custom_call.1} parent=1 // pred_check
      _
    $region27: #{tpu_custom_call.1} parent=1 // pred_check_branch
      %1541 = sbr.rel (0) target = $region29
    $region28: #{tpu_custom_call.1} parent=1 // pred_region
      %1542 = dma.done [#allocation6], 1024
    $region29: #{tpu_custom_call.1} parent=1 // pred_fallthru
      _
    %1543 = vsyncpa [#allocation5], 1
    %1544 = vsyncpa [#allocation8], 1
    %1545 = vsyncpa [#allocation6], 1

</llo_original>
